<compile_context>
chip_gen: v7x
topology: tpu7x:2x2x1
jax: 0.10.0
libtpu: 0.0.40
codegen_flags: <defaults>
</compile_context>

<pallas_src>
import functools
import math

import jax
import jax.numpy as jnp
from jax.experimental import pallas as pl
from jax.experimental.pallas import tpu as pltpu


_LANE = 128
_VMEM_BUDGET = 12 * 1024 * 1024        # stay well under the 32 MiB scoped VMEM we request


def _round_up(x, m):
    return (x + m - 1) // m * m


def _pool_kernel(x1_ref, x2_ref, x3_ref, out_ref, acc1, acc2, acc3, *,
                 s_total, tile, steps_per_split):
    """Streaming global max over the spatial axis for the three inputs."""
    s = pl.program_id(1)

    @pl.when(s == 0)
    def _init():
        neg_inf = jnp.full(acc1.shape, -jnp.inf, acc1.dtype)
        acc1[...] = neg_inf
        acc2[...] = neg_inf
        acc3[...] = neg_inf

    t1 = x1_ref[...]
    t2 = x2_ref[...]
    t3 = x3_ref[...]

    if s_total % tile != 0:
        # Static branch (compiled away when S divides evenly): mask the padded
        # tail of the partial last tile with -inf so it never wins the max.
        # These few extra VPU ops are free filler in a DMA-bound kernel.
        c = pl.program_id(0)
        off = (c * steps_per_split + s) * tile
        lane = jax.lax.broadcasted_iota(jnp.int32, t1.shape, 1)
        valid = (lane + off) < s_total
        neg = jnp.float32(-jnp.inf)
        t1 = jnp.where(valid, t1, neg)
        t2 = jnp.where(valid, t2, neg)
        t3 = jnp.where(valid, t3, neg)

    # Pure element-wise (VPU) running max: no per-step cross-lane reduce.
    acc1[...] = jnp.maximum(acc1[...], t1)
    acc2[...] = jnp.maximum(acc2[...], t2)
    acc3[...] = jnp.maximum(acc3[...], t3)

    @pl.when(s == steps_per_split - 1)
    def _epilogue():
        # One XLU lane-reduce per input, once per split.
        out_ref[0, 0] = jnp.max(acc1[...], axis=-1, keepdims=True)   # (B*C, 1)
        out_ref[0, 1] = jnp.max(acc2[...], axis=-1, keepdims=True)
        out_ref[0, 2] = jnp.max(acc3[...], axis=-1, keepdims=True)


def _epilogue_kernel(pooled_ref, conv_wt_ref, conv_b_ref,
                     lw1_ref, lw2_ref, lw3_ref, lin_b_ref,
                     out_ref, c_scratch, *, batch):
    """Combine splits + 1x1x1 conv + Linear + softmax(dim=0).  All tiny."""
    B = batch
    # Combine the per-split partial maxes (axis 0 = megacore split axis).
    p_all = jnp.max(pooled_ref[...], axis=0)                        # (3B, C)

    # 1x1x1 Conv3d == dense layer over channels: one fused MXU dot for the
    # three stacked inputs (single weight push / result drain).
    c_scratch[...] = (jnp.dot(p_all, conv_wt_ref[...],
                              preferred_element_type=jnp.float32)
                      + conv_b_ref[...])                            # (3B, C)
    c1 = c_scratch[0 * B:1 * B, :]
    c2 = c_scratch[1 * B:2 * B, :]
    c3 = c_scratch[2 * B:3 * B, :]

    # Linear(3C, 3C) on concat([c1, c2, c3], dim=1) without materializing the
    # concat: lin_w.T was pre-split into three (C, 3C) row blocks.
    a = (jnp.dot(c1, lw1_ref[...], preferred_element_type=jnp.float32)
         + jnp.dot(c2, lw2_ref[...], preferred_element_type=jnp.float32)
         + jnp.dot(c3, lw3_ref[...], preferred_element_type=jnp.float32)
         + lin_b_ref[...])                                          # (B, 3C)

    # softmax over dim=0 (batch axis), exactly as in the PyTorch module.
    m = jnp.max(a, axis=0, keepdims=True)
    e = jnp.exp(a - m)                                              # EUP
    denom = jnp.sum(e, axis=0, keepdims=True)
    # approx=False keeps the 1e-5 tolerance; approx=True is an option if not.
    out_ref[...] = e * pl.reciprocal(denom, approx=False)


@jax.jit
def attentionblock_forward(x1, x2, x3, conv_w, conv_b, lin_w, lin_b):
    """x1/x2/x3: (B, C, D, H, W) float32 (NCDHW).  Returns (B, 3C) float32.

    Note: the PyTorch `.squeeze()` collapses (B, C, 1, 1, 1) to (B, C); this
    assumes B > 1 and C > 1 (same assumption as the reference module).
    """
    B, C, D, H, W = x1.shape
    S = D * H * W
    ROWS = B * C

    # ---- static tiling choice ----------------------------------------------
    # 3 inputs x 2 pipeline buffers + 3 running-max accumulators = 9 tile-sized
    # f32 buffers.  Pick the largest lane-multiple tile that fits the budget
    # (fits v5e/v6e comfortably and stays far under v7x's 64 MiB VMEM).
    rows_pad = _round_up(ROWS, 8)
    s_pad = _round_up(S, _LANE)
    tile_budget = (_VMEM_BUDGET // (9 * rows_pad * 4)) // _LANE * _LANE
    tile = max(_LANE, min(s_pad, tile_budget))
    # TODO(synk): if B*C ever grows past ~2700 rows, add a row-tiling grid axis
    # instead of relying on the 128-lane floor (would exceed the VMEM budget).
    n_blocks = pl.cdiv(S, tile)
    n_split = 2 if (n_blocks % 2 == 0 and n_blocks >= 2) else 1
    steps_per_split = n_blocks // n_split

    # ---- phase 1: streaming global max-pool --------------------------------
    x1f = x1.reshape(ROWS, S)
    x2f = x2.reshape(ROWS, S)
    x3f = x3.reshape(ROWS, S)

    x_spec = pl.BlockSpec((ROWS, tile),
                          lambda c, s: (0, c * steps_per_split + s))
    pooled = pl.pallas_call(
        functools.partial(_pool_kernel, s_total=S, tile=tile,
                          steps_per_split=steps_per_split),
        out_shape=jax.ShapeDtypeStruct((n_split, 3, ROWS, 1), jnp.float32),
        grid=(n_split, steps_per_split),
        in_specs=[x_spec, x_spec, x_spec],
        out_specs=pl.BlockSpec((1, 3, ROWS, 1), lambda c, s: (c, 0, 0, 0)),
        scratch_shapes=[pltpu.VMEM((ROWS, tile), jnp.float32),
                        pltpu.VMEM((ROWS, tile), jnp.float32),
                        pltpu.VMEM((ROWS, tile), jnp.float32)],
        compiler_params=pltpu.CompilerParams(
            dimension_semantics=("parallel", "arbitrary"),
            vmem_limit_bytes=32 * 1024 * 1024),
    )(x1f, x2f, x3f)

    # ---- glue: metadata-only reshapes / weight prep (plain JAX) -------------
    # (n_split, 3, B*C, 1) -> (n_split, 3B, C): rows are [p1; p2; p3] stacked.
    pooled = pooled.reshape(n_split, 3 * B, C)
    conv_wt = conv_w.reshape(C, C).T            # so that  p @ conv_w.T
    conv_b2 = conv_b.reshape(1, C)
    lin_wt = lin_w.T                            # (3C, 3C)
    lw1 = lin_wt[0 * C:1 * C, :]
    lw2 = lin_wt[1 * C:2 * C, :]
    lw3 = lin_wt[2 * C:3 * C, :]
    lin_b2 = lin_b.reshape(1, 3 * C)

    # ---- phase 2: tiny epilogue (conv + linear + softmax) -------------------
    vmem = pl.BlockSpec(memory_space=pltpu.MemorySpace.VMEM)
    return pl.pallas_call(
        functools.partial(_epilogue_kernel, batch=B),
        out_shape=jax.ShapeDtypeStruct((B, 3 * C), jnp.float32),
        in_specs=[vmem] * 7,
        out_specs=vmem,
        scratch_shapes=[pltpu.VMEM((3 * B, C), jnp.float32)],
    )(pooled, conv_wt, conv_b2, lw1, lw2, lw3, lin_b2)


def _reference(x1, x2, x3, conv_w, conv_b, lin_w, lin_b):
    """Pure-JAX reference mirroring the PyTorch forward."""
    B, C = x1.shape[0], x1.shape[1]

    def pool_conv(x):
        p = jnp.max(x.reshape(B, C, -1), axis=-1)        # AdaptiveMaxPool3d(1) + squeeze
        return p @ conv_w.reshape(C, C).T + conv_b        # 1x1x1 Conv3d

    a = jnp.concatenate([pool_conv(x1), pool_conv(x2), pool_conv(x3)], axis=1)
    a = a @ lin_w.T + lin_b
    return jax.nn.softmax(a, axis=0)


if __name__ == "__main__":
    key = jax.random.PRNGKey(0)
    B, C, D, H, W = 2, 4, 16, 16, 32             # small NCDHW shapes (S = 8192)
    ks = jax.random.split(key, 7)

    x1 = jax.random.normal(ks[0], (B, C, D, H, W), jnp.float32)
    x2 = jax.random.normal(ks[1], (B, C, D, H, W), jnp.float32)
    x3 = jax.random.normal(ks[2], (B, C, D, H, W), jnp.float32)

    # Deterministic parameter init (PyTorch-style uniform fan-in bounds).
    cb_bound = 1.0 / math.sqrt(C)                # Conv3d fan_in = C * 1 * 1 * 1
    lb_bound = 1.0 / math.sqrt(3 * C)            # Linear fan_in = 3C
    conv_w = jax.random.uniform(ks[3], (C, C, 1, 1, 1), jnp.float32,
                                -cb_bound, cb_bound)
    conv_b = jax.random.uniform(ks[4], (C,), jnp.float32, -cb_bound, cb_bound)
    lin_w = jax.random.uniform(ks[5], (3 * C, 3 * C), jnp.float32,
                               -lb_bound, lb_bound)
    lin_b = jax.random.uniform(ks[6], (3 * C,), jnp.float32, -lb_bound, lb_bound)

    out = attentionblock_forward(x1, x2, x3, conv_w, conv_b, lin_w, lin_b)
    out = jax.block_until_ready(out)

    ref = _reference(x1, x2, x3, conv_w, conv_b, lin_w, lin_b)
    assert out.shape == (B, 3 * C)
    assert jnp.allclose(out, ref, atol=1e-5, rtol=1e-5), "mismatch vs JAX reference"

    print("KERNEL_OK")
</pallas_src>

<mosaic_0001>
module attributes {stable_mosaic.version = 11 : i64} {
  func.func @_pool_kernel(%arg0: i32, %arg1: i32, %arg2: memref<8x8192xf32, #tpu.memory_space<vmem>>, %arg3: memref<8x8192xf32, #tpu.memory_space<vmem>>, %arg4: memref<8x8192xf32, #tpu.memory_space<vmem>>, %arg5: memref<1x3x8x1xf32, #tpu.memory_space<vmem>>, %arg6: memref<8x8192xf32, #tpu.memory_space<vmem>>, %arg7: memref<8x8192xf32, #tpu.memory_space<vmem>>, %arg8: memref<8x8192xf32, #tpu.memory_space<vmem>>) attributes {dimension_semantics = [#tpu.dimension_semantics<parallel>, #tpu.dimension_semantics<arbitrary>], iteration_bounds = array<i64: 1, 1>, scalar_prefetch = 0 : i64, scratch_operands = 3 : i64, tpu.core_type = #tpu.core_type<tc>, window_params = [{transform_indices = @transform_0, window_bounds = array<i64: 8, 8192>}, {transform_indices = @transform_1, window_bounds = array<i64: 8, 8192>}, {transform_indices = @transform_2, window_bounds = array<i64: 8, 8192>}, {transform_indices = @transform_3, window_bounds = array<i64: 1, 3, 8, 1>}]} {
    %c0_i32 = arith.constant 0 : i32
    %0 = arith.cmpi eq, %arg1, %c0_i32 : i32
    %1 = arith.extui %0 : i1 to i32
    %c0_i32_0 = arith.constant 0 : i32
    %2 = arith.cmpi ne, %1, %c0_i32_0 : i32
    scf.if %2 {
      %cst = arith.constant 0xFF800000 : f32
      %18 = vector.broadcast %cst : f32 to vector<8x8192xf32>
      %c0_20 = arith.constant 0 : index
      %c0_21 = arith.constant 0 : index
      %19 = vector.load %arg6[%c0_20, %c0_21] : memref<8x8192xf32, #tpu.memory_space<vmem>>, vector<8x8192xf32>
      tpu.vector_store %arg6[%c0_20, %c0_21], %18 {strides = array<i32>} : memref<8x8192xf32, #tpu.memory_space<vmem>>, vector<8x8192xf32>,
      %c0_22 = arith.constant 0 : index
      %c0_23 = arith.constant 0 : index
      %20 = vector.load %arg7[%c0_22, %c0_23] : memref<8x8192xf32, #tpu.memory_space<vmem>>, vector<8x8192xf32>
      tpu.vector_store %arg7[%c0_22, %c0_23], %18 {strides = array<i32>} : memref<8x8192xf32, #tpu.memory_space<vmem>>, vector<8x8192xf32>,
      %c0_24 = arith.constant 0 : index
      %c0_25 = arith.constant 0 : index
      %21 = vector.load %arg8[%c0_24, %c0_25] : memref<8x8192xf32, #tpu.memory_space<vmem>>, vector<8x8192xf32>
      tpu.vector_store %arg8[%c0_24, %c0_25], %18 {strides = array<i32>} : memref<8x8192xf32, #tpu.memory_space<vmem>>, vector<8x8192xf32>,
    } else {
    }
    %c0 = arith.constant 0 : index
    %c0_1 = arith.constant 0 : index
    %3 = vector.load %arg2[%c0, %c0_1] : memref<8x8192xf32, #tpu.memory_space<vmem>>, vector<8x8192xf32>
    %c0_2 = arith.constant 0 : index
    %c0_3 = arith.constant 0 : index
    %4 = vector.load %arg3[%c0_2, %c0_3] : memref<8x8192xf32, #tpu.memory_space<vmem>>, vector<8x8192xf32>
    %c0_4 = arith.constant 0 : index
    %c0_5 = arith.constant 0 : index
    %5 = vector.load %arg4[%c0_4, %c0_5] : memref<8x8192xf32, #tpu.memory_space<vmem>>, vector<8x8192xf32>
    %c0_6 = arith.constant 0 : index
    %c0_7 = arith.constant 0 : index
    %6 = vector.load %arg6[%c0_6, %c0_7] : memref<8x8192xf32, #tpu.memory_space<vmem>>, vector<8x8192xf32>
    %7 = arith.maximumf %6, %3 : vector<8x8192xf32>
    %c0_8 = arith.constant 0 : index
    %c0_9 = arith.constant 0 : index
    %8 = vector.load %arg6[%c0_8, %c0_9] : memref<8x8192xf32, #tpu.memory_space<vmem>>, vector<8x8192xf32>
    tpu.vector_store %arg6[%c0_8, %c0_9], %7 {strides = array<i32>} : memref<8x8192xf32, #tpu.memory_space<vmem>>, vector<8x8192xf32>,
    %c0_10 = arith.constant 0 : index
    %c0_11 = arith.constant 0 : index
    %9 = vector.load %arg7[%c0_10, %c0_11] : memref<8x8192xf32, #tpu.memory_space<vmem>>, vector<8x8192xf32>
    %10 = arith.maximumf %9, %4 : vector<8x8192xf32>
    %c0_12 = arith.constant 0 : index
    %c0_13 = arith.constant 0 : index
    %11 = vector.load %arg7[%c0_12, %c0_13] : memref<8x8192xf32, #tpu.memory_space<vmem>>, vector<8x8192xf32>
    tpu.vector_store %arg7[%c0_12, %c0_13], %10 {strides = array<i32>} : memref<8x8192xf32, #tpu.memory_space<vmem>>, vector<8x8192xf32>,
    %c0_14 = arith.constant 0 : index
    %c0_15 = arith.constant 0 : index
    %12 = vector.load %arg8[%c0_14, %c0_15] : memref<8x8192xf32, #tpu.memory_space<vmem>>, vector<8x8192xf32>
    %13 = arith.maximumf %12, %5 : vector<8x8192xf32>
    %c0_16 = arith.constant 0 : index
    %c0_17 = arith.constant 0 : index
    %14 = vector.load %arg8[%c0_16, %c0_17] : memref<8x8192xf32, #tpu.memory_space<vmem>>, vector<8x8192xf32>
    tpu.vector_store %arg8[%c0_16, %c0_17], %13 {strides = array<i32>} : memref<8x8192xf32, #tpu.memory_space<vmem>>, vector<8x8192xf32>,
    %c0_i32_18 = arith.constant 0 : i32
    %15 = arith.cmpi eq, %arg1, %c0_i32_18 : i32
    %16 = arith.extui %15 : i1 to i32
    %c0_i32_19 = arith.constant 0 : i32
    %17 = arith.cmpi ne, %16, %c0_i32_19 : i32
    scf.if %17 {
      %c0_20 = arith.constant 0 : index
      %c0_21 = arith.constant 0 : index
      %18 = vector.load %arg6[%c0_20, %c0_21] : memref<8x8192xf32, #tpu.memory_space<vmem>>, vector<8x8192xf32>
      %cst = arith.constant dense<0xFF800000> : vector<8xf32>
      %19 = vector.multi_reduction <maximumf>, %18, %cst [1] : vector<8x8192xf32> to vector<8xf32>
      %20 = vector.shape_cast %19 : vector<8xf32> to vector<8x1xf32>
      %c0_22 = arith.constant 0 : index
      %c0_23 = arith.constant 0 : index
      %c0_24 = arith.constant 0 : index
      %c0_25 = arith.constant 0 : index
      %21 = vector.load %arg5[%c0_22, %c0_23, %c0_24, %c0_25] : memref<1x3x8x1xf32, #tpu.memory_space<vmem>>, vector<1x1x8x1xf32>
      %22 = vector.shape_cast %21 : vector<1x1x8x1xf32> to vector<8x1xf32>
      %23 = vector.shape_cast %20 : vector<8x1xf32> to vector<1x1x8x1xf32>
      tpu.vector_store %arg5[%c0_22, %c0_23, %c0_24, %c0_25], %23 {strides = array<i32>} : memref<1x3x8x1xf32, #tpu.memory_space<vmem>>, vector<1x1x8x1xf32>,
      %c0_26 = arith.constant 0 : index
      %c0_27 = arith.constant 0 : index
      %24 = vector.load %arg7[%c0_26, %c0_27] : memref<8x8192xf32, #tpu.memory_space<vmem>>, vector<8x8192xf32>
      %cst_28 = arith.constant dense<0xFF800000> : vector<8xf32>
      %25 = vector.multi_reduction <maximumf>, %24, %cst_28 [1] : vector<8x8192xf32> to vector<8xf32>
      %26 = vector.shape_cast %25 : vector<8xf32> to vector<8x1xf32>
      %c0_29 = arith.constant 0 : index
      %c1 = arith.constant 1 : index
      %c0_30 = arith.constant 0 : index
      %c0_31 = arith.constant 0 : index
      %27 = vector.load %arg5[%c0_29, %c1, %c0_30, %c0_31] : memref<1x3x8x1xf32, #tpu.memory_space<vmem>>, vector<1x1x8x1xf32>
      %28 = vector.shape_cast %27 : vector<1x1x8x1xf32> to vector<8x1xf32>
      %29 = vector.shape_cast %26 : vector<8x1xf32> to vector<1x1x8x1xf32>
      tpu.vector_store %arg5[%c0_29, %c1, %c0_30, %c0_31], %29 {strides = array<i32>} : memref<1x3x8x1xf32, #tpu.memory_space<vmem>>, vector<1x1x8x1xf32>,
      %c0_32 = arith.constant 0 : index
      %c0_33 = arith.constant 0 : index
      %30 = vector.load %arg8[%c0_32, %c0_33] : memref<8x8192xf32, #tpu.memory_space<vmem>>, vector<8x8192xf32>
      %cst_34 = arith.constant dense<0xFF800000> : vector<8xf32>
      %31 = vector.multi_reduction <maximumf>, %30, %cst_34 [1] : vector<8x8192xf32> to vector<8xf32>
      %32 = vector.shape_cast %31 : vector<8xf32> to vector<8x1xf32>
      %c0_35 = arith.constant 0 : index
      %c2 = arith.constant 2 : index
      %c0_36 = arith.constant 0 : index
      %c0_37 = arith.constant 0 : index
      %33 = vector.load %arg5[%c0_35, %c2, %c0_36, %c0_37] : memref<1x3x8x1xf32, #tpu.memory_space<vmem>>, vector<1x1x8x1xf32>
      %34 = vector.shape_cast %33 : vector<1x1x8x1xf32> to vector<8x1xf32>
      %35 = vector.shape_cast %32 : vector<8x1xf32> to vector<1x1x8x1xf32>
      tpu.vector_store %arg5[%c0_35, %c2, %c0_36, %c0_37], %35 {strides = array<i32>} : memref<1x3x8x1xf32, #tpu.memory_space<vmem>>, vector<1x1x8x1xf32>,
    } else {
    }
    return
  }
  func.func @transform_0(%arg0: i32, %arg1: i32) -> (i32, i32) {
    %c1_i32 = arith.constant 1 : i32
    %0 = arith.muli %arg0, %c1_i32 : i32
    %1 = arith.addi %0, %arg1 : i32
    %c0_i32 = arith.constant 0 : i32
    %c0_i32_0 = arith.constant 0 : i32
    return %c0_i32, %1 : i32, i32
  }
  func.func @transform_1(%arg0: i32, %arg1: i32) -> (i32, i32) {
    %c1_i32 = arith.constant 1 : i32
    %0 = arith.muli %arg0, %c1_i32 : i32
    %1 = arith.addi %0, %arg1 : i32
    %c0_i32 = arith.constant 0 : i32
    %c0_i32_0 = arith.constant 0 : i32
    return %c0_i32, %1 : i32, i32
  }
  func.func @transform_2(%arg0: i32, %arg1: i32) -> (i32, i32) {
    %c1_i32 = arith.constant 1 : i32
    %0 = arith.muli %arg0, %c1_i32 : i32
    %1 = arith.addi %0, %arg1 : i32
    %c0_i32 = arith.constant 0 : i32
    %c0_i32_0 = arith.constant 0 : i32
    return %c0_i32, %1 : i32, i32
  }
  func.func @transform_3(%arg0: i32, %arg1: i32) -> (i32, i32, i32, i32) {
    %c0_i32 = arith.constant 0 : i32
    %c0_i32_0 = arith.constant 0 : i32
    %c0_i32_1 = arith.constant 0 : i32
    %c0_i32_2 = arith.constant 0 : i32
    return %arg0, %c0_i32, %c0_i32_0, %c0_i32_1 : i32, i32, i32, i32
  }
}

module attributes {stable_mosaic.version = 11 : i64} {
  func.func @_epilogue_kernel(%arg0: memref<1x6x4xf32, #tpu.memory_space<vmem>>, %arg1: memref<4x4xf32, #tpu.memory_space<vmem>>, %arg2: memref<1x4xf32, #tpu.memory_space<vmem>>, %arg3: memref<4x12xf32, #tpu.memory_space<vmem>>, %arg4: memref<4x12xf32, #tpu.memory_space<vmem>>, %arg5: memref<4x12xf32, #tpu.memory_space<vmem>>, %arg6: memref<1x12xf32, #tpu.memory_space<vmem>>, %arg7: memref<2x12xf32, #tpu.memory_space<vmem>>, %arg8: memref<6x4xf32, #tpu.memory_space<vmem>>) attributes {dimension_semantics = [], scalar_prefetch = 0 : i64, scratch_operands = 1 : i64, tpu.core_type = #tpu.core_type<tc>} {
    %c0 = arith.constant 0 : index
    %c0_0 = arith.constant 0 : index
    %c0_1 = arith.constant 0 : index
    %0 = vector.load %arg0[%c0, %c0_0, %c0_1] : memref<1x6x4xf32, #tpu.memory_space<vmem>>, vector<1x6x4xf32>
    %cst = arith.constant dense<0xFF800000> : vector<6x4xf32>
    %1 = vector.multi_reduction <maximumf>, %0, %cst [0] : vector<1x6x4xf32> to vector<6x4xf32>
    %c0_2 = arith.constant 0 : index
    %c0_3 = arith.constant 0 : index
    %2 = vector.load %arg1[%c0_2, %c0_3] : memref<4x4xf32, #tpu.memory_space<vmem>>, vector<4x4xf32>
    %cst_4 = arith.constant dense<0.000000e+00> : vector<6x4xf32>
    %3 = tpu.matmul %1, %2, %cst_4 {dimension_numbers = #tpu.dot_dimension_numbers<[1], [0], [0], [1], [0, 0, 1, 1], [], []>} : vector<6x4xf32>, vector<4x4xf32>, vector<6x4xf32> -> vector<6x4xf32>
    %c0_5 = arith.constant 0 : index
    %c0_6 = arith.constant 0 : index
    %4 = vector.load %arg2[%c0_5, %c0_6] : memref<1x4xf32, #tpu.memory_space<vmem>>, vector<1x4xf32>
    %5 = vector.broadcast %4 : vector<1x4xf32> to vector<6x4xf32>
    %6 = arith.addf %3, %5 : vector<6x4xf32>
    %c0_7 = arith.constant 0 : index
    %c0_8 = arith.constant 0 : index
    %7 = vector.load %arg8[%c0_7, %c0_8] : memref<6x4xf32, #tpu.memory_space<vmem>>, vector<6x4xf32>
    tpu.vector_store %arg8[%c0_7, %c0_8], %6 {strides = array<i32>} : memref<6x4xf32, #tpu.memory_space<vmem>>, vector<6x4xf32>,
    %c0_9 = arith.constant 0 : index
    %c0_10 = arith.constant 0 : index
    %8 = vector.load %arg8[%c0_9, %c0_10] : memref<6x4xf32, #tpu.memory_space<vmem>>, vector<2x4xf32>
    %c2 = arith.constant 2 : index
    %c0_11 = arith.constant 0 : index
    %9 = vector.load %arg8[%c2, %c0_11] : memref<6x4xf32, #tpu.memory_space<vmem>>, vector<2x4xf32>
    %c4 = arith.constant 4 : index
    %c0_12 = arith.constant 0 : index
    %10 = vector.load %arg8[%c4, %c0_12] : memref<6x4xf32, #tpu.memory_space<vmem>>, vector<2x4xf32>
    %c0_13 = arith.constant 0 : index
    %c0_14 = arith.constant 0 : index
    %11 = vector.load %arg3[%c0_13, %c0_14] : memref<4x12xf32, #tpu.memory_space<vmem>>, vector<4x12xf32>
    %cst_15 = arith.constant dense<0.000000e+00> : vector<2x12xf32>
    %12 = tpu.matmul %8, %11, %cst_15 {dimension_numbers = #tpu.dot_dimension_numbers<[1], [0], [0], [1], [0, 0, 1, 1], [], []>} : vector<2x4xf32>, vector<4x12xf32>, vector<2x12xf32> -> vector<2x12xf32>
    %c0_16 = arith.constant 0 : index
    %c0_17 = arith.constant 0 : index
    %13 = vector.load %arg4[%c0_16, %c0_17] : memref<4x12xf32, #tpu.memory_space<vmem>>, vector<4x12xf32>
    %cst_18 = arith.constant dense<0.000000e+00> : vector<2x12xf32>
    %14 = tpu.matmul %9, %13, %cst_18 {dimension_numbers = #tpu.dot_dimension_numbers<[1], [0], [0], [1], [0, 0, 1, 1], [], []>} : vector<2x4xf32>, vector<4x12xf32>, vector<2x12xf32> -> vector<2x12xf32>
    %15 = arith.addf %12, %14 : vector<2x12xf32>
    %c0_19 = arith.constant 0 : index
    %c0_20 = arith.constant 0 : index
    %16 = vector.load %arg5[%c0_19, %c0_20] : memref<4x12xf32, #tpu.memory_space<vmem>>, vector<4x12xf32>
    %cst_21 = arith.constant dense<0.000000e+00> : vector<2x12xf32>
    %17 = tpu.matmul %10, %16, %cst_21 {dimension_numbers = #tpu.dot_dimension_numbers<[1], [0], [0], [1], [0, 0, 1, 1], [], []>} : vector<2x4xf32>, vector<4x12xf32>, vector<2x12xf32> -> vector<2x12xf32>
    %18 = arith.addf %15, %17 : vector<2x12xf32>
    %c0_22 = arith.constant 0 : index
    %c0_23 = arith.constant 0 : index
    %19 = vector.load %arg6[%c0_22, %c0_23] : memref<1x12xf32, #tpu.memory_space<vmem>>, vector<1x12xf32>
    %20 = vector.broadcast %19 : vector<1x12xf32> to vector<2x12xf32>
    %21 = arith.addf %18, %20 : vector<2x12xf32>
    %cst_24 = arith.constant dense<0xFF800000> : vector<12xf32>
    %22 = vector.multi_reduction <maximumf>, %21, %cst_24 [0] : vector<2x12xf32> to vector<12xf32>
    %23 = vector.shape_cast %22 : vector<12xf32> to vector<1x12xf32>
    %24 = vector.broadcast %23 : vector<1x12xf32> to vector<2x12xf32>
    %25 = arith.subf %21, %24 : vector<2x12xf32>
    %26 = math.exp %25 : vector<2x12xf32>
    %cst_25 = arith.constant dense<0.000000e+00> : vector<12xf32>
    %27 = vector.multi_reduction <add>, %26, %cst_25 [0] : vector<2x12xf32> to vector<12xf32>
    %28 = vector.shape_cast %27 : vector<12xf32> to vector<1x12xf32>
    %29 = tpu.reciprocal %28 : vector<1x12xf32> -> vector<1x12xf32>
    %30 = vector.broadcast %29 : vector<1x12xf32> to vector<2x12xf32>
    %31 = arith.mulf %26, %30 : vector<2x12xf32>
    %c0_26 = arith.constant 0 : index
    %c0_27 = arith.constant 0 : index
    %32 = vector.load %arg7[%c0_26, %c0_27] : memref<2x12xf32, #tpu.memory_space<vmem>>, vector<2x12xf32>
    tpu.vector_store %arg7[%c0_26, %c0_27], %31 {strides = array<i32>} : memref<2x12xf32, #tpu.memory_space<vmem>>, vector<2x12xf32>,
    return
  }
}

</mosaic_0001>

<llo_original>
// kernel: attentionblock_forward.3
$region0: #{attentionblock_forward.3}
  #allocation0 [shape = 'u32[]', space=smem, size = 0x4, offset = 0x4, fixed_abs, tag = 'smem constant byte address 0x4 - core index']
  #allocation1 [shape = 'u32[144,128]{1,0:T(1,128)}', space=vmem, size = 0x12000, scoped, tag = 'internal scratch']
  #allocation2 [shape = 'f32[6,4]{1,0:T(8,128)}', space=vmem, size = 0x1000, scoped, tag = 'scratch operand']
  %s0 = inlined_call_operand.vmem [shape: f32[1,6,4], index: 0, kind: input, shape index: {}]
  %s1 = inlined_call_operand.vmem [shape: f32[4,4], index: 1, kind: input, shape index: {}]
  %s2 = inlined_call_operand.vmem [shape: f32[1,4], index: 2, kind: input, shape index: {}]
  %s3 = inlined_call_operand.vmem [shape: f32[4,12], index: 3, kind: input, shape index: {}]
  %s4 = inlined_call_operand.vmem [shape: f32[4,12], index: 4, kind: input, shape index: {}]
  %s5 = inlined_call_operand.vmem [shape: f32[4,12], index: 5, kind: input, shape index: {}]
  %s6 = inlined_call_operand.vmem [shape: f32[1,12], index: 6, kind: input, shape index: {}]
  %s7 = inlined_call_operand.hbm [shape: f32[2,12], index: 7, kind: output, shape index: {}]
  %s8 = sld [smem:[#allocation0]]
  $region38: #{attentionblock_forward.3} parent=0
    _
  %s10 = ssub.s32 1, %s8
  %s11 = scalar_select 0, %s10, %s8
  $region1: #{attentionblock_forward.3} parent=0
    #allocation3 [shape = 'u8[1024]{0}', space=vmem, size = 0x400, scoped, tag = 'output window, operand 0, single buffered']
    #allocation4 [shape = 's32[1]{0}', space=sflag, size = 0x4, scoped, tag = 'scoped memory for attentionblock_forward.3']
    %12 = vsyncpa [#allocation4], 0
    // Predicated region
    $region2: #{attentionblock_forward.3} parent=1 // pred_check
      _
    $region3: #{attentionblock_forward.3} parent=1 // pred_check_branch
      %14 = sbr.rel (0) target = $region5
    $region4: #{attentionblock_forward.3} parent=1 // pred_region
      _
    $region5: #{attentionblock_forward.3} parent=1 // pred_fallthru
      _
    // Predicated region
    $region6: #{attentionblock_forward.3} parent=1 // pred_check
      _
    $region7: #{attentionblock_forward.3} parent=1 // pred_check_branch
      %16 = sbr.rel (0) target = $region9
    $region8: #{attentionblock_forward.3} parent=1 // pred_region
      _
    $region9: #{attentionblock_forward.3} parent=1 // pred_fallthru
      _
    // Predicated region
    $region10: #{attentionblock_forward.3} parent=1 // pred_check
      _
    $region11: #{attentionblock_forward.3} parent=1 // pred_check_branch
      %18 = sbr.rel (0) target = $region13
    $region12: #{attentionblock_forward.3} parent=1 // pred_region
      _
    $region13: #{attentionblock_forward.3} parent=1 // pred_fallthru
      _
    // Predicated region
    $region14: #{attentionblock_forward.3} parent=1 // pred_check
      _
    $region15: #{attentionblock_forward.3} parent=1 // pred_check_branch
      %20 = sbr.rel (0) target = $region17
    $region16: #{attentionblock_forward.3} parent=1 // pred_region
      _
    $region17: #{attentionblock_forward.3} parent=1 // pred_fallthru
      _
    // Predicated region
    $region18: #{attentionblock_forward.3} parent=1 // pred_check
      _
    $region19: #{attentionblock_forward.3} parent=1 // pred_check_branch
      %22 = sbr.rel (0) target = $region21
    $region20: #{attentionblock_forward.3} parent=1 // pred_region
      _
    $region21: #{attentionblock_forward.3} parent=1 // pred_fallthru
      _
    // Predicated region
    $region22: #{attentionblock_forward.3} parent=1 // pred_check
      _
    $region23: #{attentionblock_forward.3} parent=1 // pred_check_branch
      %24 = sbr.rel (0) target = $region25
    $region24: #{attentionblock_forward.3} parent=1 // pred_region
      _
    $region25: #{attentionblock_forward.3} parent=1 // pred_fallthru
      _
    // Predicated region
    $region26: #{attentionblock_forward.3} parent=1 // pred_check
      _
    $region27: #{attentionblock_forward.3} parent=1 // pred_check_branch
      %26 = sbr.rel (0) target = $region29
    $region28: #{attentionblock_forward.3} parent=1 // pred_region
      _
    $region29: #{attentionblock_forward.3} parent=1 // pred_fallthru
      _
    %v27 = vld [vmem:[%s0] sm:$0x3f]
    %v28 = vld [vmem:[%s1] sm:$0xf]
    %v29 = vld [vmem:[%s2] sm:$0x1]
    %v31 = vlaneseq
    %v32 = vshrl.u32 %v31, 7
    %v33 = vsub.s32 0, %v32
    %v34 = vrot.slane %v29, %v33
    %vm36 = vcmask 31744
    %v38 = vsel %vm36, %v27, 0
    %vm40 = vcmask 1043456
    %v42 = vsel %vm40, %v28, 0
    %44 = vmatprep.subr.mxu0 0.0
    %45 = vmatpush1.msra.mxu0 %v42
    %46 = vmatprep.subr.mxu0 0.0
    %47 = vmatpush1.msra.mxu0 0.0
    %48 = vmatprep.subr.mxu0 0.0
    %49 = vmatpush1.msra.mxu0 0.0
    %50 = vmatprep.subr.mxu0 0.0
    %51 = vmatpush1.msra.mxu0 0.0
    %52 = vmatprep.subr.mxu0 0.0
    %53 = vmatpush1.msra.mxu0 0.0
    %54 = vmatprep.subr.mxu0 0.0
    %55 = vmatpush1.msra.mxu0 0.0
    %56 = vmatprep.subr.mxu0 0.0
    %57 = vmatpush1.msra.mxu0 0.0
    %58 = vmatprep.subr.mxu0 0.0
    %59 = vmatpush1.msra.mxu0 0.0
    %60 = vmatprep.subr.mxu0 0.0
    %61 = vmatpush1.msra.mxu0 0.0
    %62 = vmatprep.subr.mxu0 0.0
    %63 = vmatpush1.msra.mxu0 0.0
    %64 = vmatprep.subr.mxu0 0.0
    %65 = vmatpush1.msra.mxu0 0.0
    %66 = vmatprep.subr.mxu0 0.0
    %67 = vmatpush1.msra.mxu0 0.0
    %68 = vmatprep.subr.mxu0 0.0
    %69 = vmatpush1.msra.mxu0 0.0
    %70 = vmatprep.subr.mxu0 0.0
    %71 = vmatpush1.msra.mxu0 0.0
    %72 = vmatprep.subr.mxu0 0.0
    %73 = vmatpush1.msra.mxu0 0.0
    %74 = vmatprep.subr.mxu0 0.0
    %75 = vmatpush1.msra.mxu0 0.0
    %76 = vmatprep.subr.mxu0 0.0
    %77 = vmatpush1.msra.mxu0 0.0
    %78 = vmatprep.subr.mxu0 0.0
    %79 = vmatpush1.msra.mxu0 0.0
    %80 = vmatprep.subr.mxu0 0.0
    %81 = vmatpush1.msra.mxu0 0.0
    %82 = vmatprep.subr.mxu0 0.0
    %83 = vmatpush1.msra.mxu0 0.0
    %84 = vmatprep.subr.mxu0 0.0
    %85 = vmatpush1.msra.mxu0 0.0
    %86 = vmatprep.subr.mxu0 0.0
    %87 = vmatpush1.msra.mxu0 0.0
    %88 = vmatprep.subr.mxu0 0.0
    %89 = vmatpush1.msra.mxu0 0.0
    %90 = vmatprep.subr.mxu0 0.0
    %91 = vmatpush1.msra.mxu0 0.0
    %92 = vmatprep.subr.mxu0 0.0
    %93 = vmatpush1.msra.mxu0 0.0
    %94 = vmatprep.subr.mxu0 0.0
    %95 = vmatpush1.msra.mxu0 0.0
    %96 = vmatprep.subr.mxu0 0.0
    %97 = vmatpush1.msra.mxu0 0.0
    %98 = vmatprep.subr.mxu0 0.0
    %99 = vmatpush1.msra.mxu0 0.0
    %100 = vmatprep.subr.mxu0 0.0
    %101 = vmatpush1.msra.mxu0 0.0
    %102 = vmatprep.subr.mxu0 0.0
    %103 = vmatpush1.msra.mxu0 0.0
    %104 = vmatprep.subr.mxu0 0.0
    %105 = vmatpush1.msra.mxu0 0.0
    %106 = vmatprep.subr.mxu0 0.0
    %107 = vmatpush1.msra.mxu0 0.0
    %108 = vmatprep.mubr.f32.mxu0 0.0
    %109 = vmatmul.mubr.f32.gmra.mrb[0].mxu0 %v38
    %v110 = vpop.f32.mrb[0].mxu0
    %v111 = vadd.f32 %v34, %v110
    %v112 = vpop.f32.mrb[0].mxu0
    %113 = vdwg.mxu0
    %vm114 = vcmask 29696
    %115 = vst.msk [vmem:[#allocation2] sm:$0x3f] %vm114, %v111
    %v116 = vld [vmem:[#allocation2] sm:$0x3]
    %v117 = vld [vmem:[#allocation2 + $0x2] sm:$0x3]
    %v118 = vld [vmem:[#allocation2 + $0x4] sm:$0x3]
    %v119 = vld [vmem:[%s3] sm:$0xf]
    %v120 = vld [vmem:[%s4] sm:$0xf]
    %v122 = vsel %vm36, %v117, 0
    %v125 = vsel %vm40, %v120, 0
    %127 = vmatprep.subr.mxu0 0.0
    %128 = vmatpush1.msra.mxu0 %v125
    %129 = vmatprep.subr.mxu0 0.0
    %130 = vmatpush1.msra.mxu0 0.0
    %131 = vmatprep.subr.mxu0 0.0
    %132 = vmatpush1.msra.mxu0 0.0
    %133 = vmatprep.subr.mxu0 0.0
    %134 = vmatpush1.msra.mxu0 0.0
    %135 = vmatprep.subr.mxu0 0.0
    %136 = vmatpush1.msra.mxu0 0.0
    %137 = vmatprep.subr.mxu0 0.0
    %138 = vmatpush1.msra.mxu0 0.0
    %139 = vmatprep.subr.mxu0 0.0
    %140 = vmatpush1.msra.mxu0 0.0
    %141 = vmatprep.subr.mxu0 0.0
    %142 = vmatpush1.msra.mxu0 0.0
    %143 = vmatprep.subr.mxu0 0.0
    %144 = vmatpush1.msra.mxu0 0.0
    %145 = vmatprep.subr.mxu0 0.0
    %146 = vmatpush1.msra.mxu0 0.0
    %147 = vmatprep.subr.mxu0 0.0
    %148 = vmatpush1.msra.mxu0 0.0
    %149 = vmatprep.subr.mxu0 0.0
    %150 = vmatpush1.msra.mxu0 0.0
    %151 = vmatprep.subr.mxu0 0.0
    %152 = vmatpush1.msra.mxu0 0.0
    %153 = vmatprep.subr.mxu0 0.0
    %154 = vmatpush1.msra.mxu0 0.0
    %155 = vmatprep.subr.mxu0 0.0
    %156 = vmatpush1.msra.mxu0 0.0
    %157 = vmatprep.subr.mxu0 0.0
    %158 = vmatpush1.msra.mxu0 0.0
    %159 = vmatprep.subr.mxu0 0.0
    %160 = vmatpush1.msra.mxu0 0.0
    %161 = vmatprep.subr.mxu0 0.0
    %162 = vmatpush1.msra.mxu0 0.0
    %163 = vmatprep.subr.mxu0 0.0
    %164 = vmatpush1.msra.mxu0 0.0
    %165 = vmatprep.subr.mxu0 0.0
    %166 = vmatpush1.msra.mxu0 0.0
    %167 = vmatprep.subr.mxu0 0.0
    %168 = vmatpush1.msra.mxu0 0.0
    %169 = vmatprep.subr.mxu0 0.0
    %170 = vmatpush1.msra.mxu0 0.0
    %171 = vmatprep.subr.mxu0 0.0
    %172 = vmatpush1.msra.mxu0 0.0
    %173 = vmatprep.subr.mxu0 0.0
    %174 = vmatpush1.msra.mxu0 0.0
    %175 = vmatprep.subr.mxu0 0.0
    %176 = vmatpush1.msra.mxu0 0.0
    %177 = vmatprep.subr.mxu0 0.0
    %178 = vmatpush1.msra.mxu0 0.0
    %179 = vmatprep.subr.mxu0 0.0
    %180 = vmatpush1.msra.mxu0 0.0
    %181 = vmatprep.subr.mxu0 0.0
    %182 = vmatpush1.msra.mxu0 0.0
    %183 = vmatprep.subr.mxu0 0.0
    %184 = vmatpush1.msra.mxu0 0.0
    %185 = vmatprep.subr.mxu0 0.0
    %186 = vmatpush1.msra.mxu0 0.0
    %187 = vmatprep.subr.mxu0 0.0
    %188 = vmatpush1.msra.mxu0 0.0
    %189 = vmatprep.subr.mxu0 0.0
    %190 = vmatpush1.msra.mxu0 0.0
    %191 = vmatprep.mubr.f32.mxu0 0.0
    %192 = vmatmul.mubr.f32.gmra.mrb[0].mxu0 %v122
    %v193 = vpop.f32.mrb[0].mxu0
    %v194 = vadd.f32 0.0, %v193
    %v195 = vpop.f32.mrb[0].mxu0
    %196 = vdwg.mxu0
    %v198 = vsel %vm36, %v116, 0
    %v201 = vsel %vm40, %v119, 0
    %203 = vmatprep.subr.mxu0 0.0
    %204 = vmatpush1.msra.mxu0 %v201
    %205 = vmatprep.subr.mxu0 0.0
    %206 = vmatpush1.msra.mxu0 0.0
    %207 = vmatprep.subr.mxu0 0.0
    %208 = vmatpush1.msra.mxu0 0.0
    %209 = vmatprep.subr.mxu0 0.0
    %210 = vmatpush1.msra.mxu0 0.0
    %211 = vmatprep.subr.mxu0 0.0
    %212 = vmatpush1.msra.mxu0 0.0
    %213 = vmatprep.subr.mxu0 0.0
    %214 = vmatpush1.msra.mxu0 0.0
    %215 = vmatprep.subr.mxu0 0.0
    %216 = vmatpush1.msra.mxu0 0.0
    %217 = vmatprep.subr.mxu0 0.0
    %218 = vmatpush1.msra.mxu0 0.0
    %219 = vmatprep.subr.mxu0 0.0
    %220 = vmatpush1.msra.mxu0 0.0
    %221 = vmatprep.subr.mxu0 0.0
    %222 = vmatpush1.msra.mxu0 0.0
    %223 = vmatprep.subr.mxu0 0.0
    %224 = vmatpush1.msra.mxu0 0.0
    %225 = vmatprep.subr.mxu0 0.0
    %226 = vmatpush1.msra.mxu0 0.0
    %227 = vmatprep.subr.mxu0 0.0
    %228 = vmatpush1.msra.mxu0 0.0
    %229 = vmatprep.subr.mxu0 0.0
    %230 = vmatpush1.msra.mxu0 0.0
    %231 = vmatprep.subr.mxu0 0.0
    %232 = vmatpush1.msra.mxu0 0.0
    %233 = vmatprep.subr.mxu0 0.0
    %234 = vmatpush1.msra.mxu0 0.0
    %235 = vmatprep.subr.mxu0 0.0
    %236 = vmatpush1.msra.mxu0 0.0
    %237 = vmatprep.subr.mxu0 0.0
    %238 = vmatpush1.msra.mxu0 0.0
    %239 = vmatprep.subr.mxu0 0.0
    %240 = vmatpush1.msra.mxu0 0.0
    %241 = vmatprep.subr.mxu0 0.0
    %242 = vmatpush1.msra.mxu0 0.0
    %243 = vmatprep.subr.mxu0 0.0
    %244 = vmatpush1.msra.mxu0 0.0
    %245 = vmatprep.subr.mxu0 0.0
    %246 = vmatpush1.msra.mxu0 0.0
    %247 = vmatprep.subr.mxu0 0.0
    %248 = vmatpush1.msra.mxu0 0.0
    %249 = vmatprep.subr.mxu0 0.0
    %250 = vmatpush1.msra.mxu0 0.0
    %251 = vmatprep.subr.mxu0 0.0
    %252 = vmatpush1.msra.mxu0 0.0
    %253 = vmatprep.subr.mxu0 0.0
    %254 = vmatpush1.msra.mxu0 0.0
    %255 = vmatprep.subr.mxu0 0.0
    %256 = vmatpush1.msra.mxu0 0.0
    %257 = vmatprep.subr.mxu0 0.0
    %258 = vmatpush1.msra.mxu0 0.0
    %259 = vmatprep.subr.mxu0 0.0
    %260 = vmatpush1.msra.mxu0 0.0
    %261 = vmatprep.subr.mxu0 0.0
    %262 = vmatpush1.msra.mxu0 0.0
    %263 = vmatprep.subr.mxu0 0.0
    %264 = vmatpush1.msra.mxu0 0.0
    %265 = vmatprep.subr.mxu0 0.0
    %266 = vmatpush1.msra.mxu0 0.0
    %267 = vmatprep.mubr.f32.mxu0 0.0
    %268 = vmatmul.mubr.f32.gmra.mrb[0].mxu0 %v198
    %v269 = vpop.f32.mrb[0].mxu0
    %v270 = vadd.f32 %v194, %v269
    %v271 = vpop.f32.mrb[0].mxu0
    %272 = vdwg.mxu0
    %v273 = vld [vmem:[%s5] sm:$0xf]
    %v275 = vsel %vm36, %v118, 0
    %v278 = vsel %vm40, %v273, 0
    %280 = vmatprep.subr.mxu0 0.0
    %281 = vmatpush1.msra.mxu0 %v278
    %282 = vmatprep.subr.mxu0 0.0
    %283 = vmatpush1.msra.mxu0 0.0
    %284 = vmatprep.subr.mxu0 0.0
    %285 = vmatpush1.msra.mxu0 0.0
    %286 = vmatprep.subr.mxu0 0.0
    %287 = vmatpush1.msra.mxu0 0.0
    %288 = vmatprep.subr.mxu0 0.0
    %289 = vmatpush1.msra.mxu0 0.0
    %290 = vmatprep.subr.mxu0 0.0
    %291 = vmatpush1.msra.mxu0 0.0
    %292 = vmatprep.subr.mxu0 0.0
    %293 = vmatpush1.msra.mxu0 0.0
    %294 = vmatprep.subr.mxu0 0.0
    %295 = vmatpush1.msra.mxu0 0.0
    %296 = vmatprep.subr.mxu0 0.0
    %297 = vmatpush1.msra.mxu0 0.0
    %298 = vmatprep.subr.mxu0 0.0
    %299 = vmatpush1.msra.mxu0 0.0
    %300 = vmatprep.subr.mxu0 0.0
    %301 = vmatpush1.msra.mxu0 0.0
    %302 = vmatprep.subr.mxu0 0.0
    %303 = vmatpush1.msra.mxu0 0.0
    %304 = vmatprep.subr.mxu0 0.0
    %305 = vmatpush1.msra.mxu0 0.0
    %306 = vmatprep.subr.mxu0 0.0
    %307 = vmatpush1.msra.mxu0 0.0
    %308 = vmatprep.subr.mxu0 0.0
    %309 = vmatpush1.msra.mxu0 0.0
    %310 = vmatprep.subr.mxu0 0.0
    %311 = vmatpush1.msra.mxu0 0.0
    %312 = vmatprep.subr.mxu0 0.0
    %313 = vmatpush1.msra.mxu0 0.0
    %314 = vmatprep.subr.mxu0 0.0
    %315 = vmatpush1.msra.mxu0 0.0
    %316 = vmatprep.subr.mxu0 0.0
    %317 = vmatpush1.msra.mxu0 0.0
    %318 = vmatprep.subr.mxu0 0.0
    %319 = vmatpush1.msra.mxu0 0.0
    %320 = vmatprep.subr.mxu0 0.0
    %321 = vmatpush1.msra.mxu0 0.0
    %322 = vmatprep.subr.mxu0 0.0
    %323 = vmatpush1.msra.mxu0 0.0
    %324 = vmatprep.subr.mxu0 0.0
    %325 = vmatpush1.msra.mxu0 0.0
    %326 = vmatprep.subr.mxu0 0.0
    %327 = vmatpush1.msra.mxu0 0.0
    %328 = vmatprep.subr.mxu0 0.0
    %329 = vmatpush1.msra.mxu0 0.0
    %330 = vmatprep.subr.mxu0 0.0
    %331 = vmatpush1.msra.mxu0 0.0
    %332 = vmatprep.subr.mxu0 0.0
    %333 = vmatpush1.msra.mxu0 0.0
    %334 = vmatprep.subr.mxu0 0.0
    %335 = vmatpush1.msra.mxu0 0.0
    %336 = vmatprep.subr.mxu0 0.0
    %337 = vmatpush1.msra.mxu0 0.0
    %338 = vmatprep.subr.mxu0 0.0
    %339 = vmatpush1.msra.mxu0 0.0
    %340 = vmatprep.subr.mxu0 0.0
    %341 = vmatpush1.msra.mxu0 0.0
    %342 = vmatprep.subr.mxu0 0.0
    %343 = vmatpush1.msra.mxu0 0.0
    %344 = vmatprep.mubr.f32.mxu0 0.0
    %345 = vmatmul.mubr.f32.gmra.mrb[0].mxu0 %v275
    %v346 = vpop.f32.mrb[0].mxu0
    %v347 = vadd.f32 0.0, %v346
    %v348 = vpop.f32.mrb[0].mxu0
    %349 = vdwg.mxu0
    %v350 = vadd.f32 %v270, %v347
    %v351 = vld [vmem:[%s6] sm:$0x1]
    %v353 = vlaneseq
    %v354 = vshrl.u32 %v353, 7
    %v355 = vsub.s32 0, %v354
    %v356 = vrot.slane %v351, %v355
    %v358 = vadd.f32 %v350, %v356
    %vm359 = vcmask 91136
    %v360 = vsel %vm359, %v358, -inf
    %v361 = vrot.slane %v360, 4
    %v362 = vmax.f32 %v360, %v361
    %v363 = vrot.slane %v362, 2
    %v364 = vmax.f32 %v362, %v363
    %v365 = vrot.slane %v364, 1
    %v366 = vmax.f32 %v364, %v365
    %v367 = vsub.f32 %v358, %v366
    %v368 = vmul.f32 %v367, 1.442695
    %v369 = vpow.pop %v368
    %v370 = vsel %vm359, %v369, 0.0
    %v371 = vrot.slane %v370, 4
    %v372 = vadd.f32 %v370, %v371
    %v373 = vrot.slane %v372, 2
    %v374 = vadd.f32 %v372, %v373
    %v375 = vrot.slane %v374, 1
    %v376 = vadd.f32 %v374, %v375
    %v377 = vrcp.pop %v376
    %v378 = vmul.f32 %v369, %v377
    %379 = vst.msk [vmem:[#allocation3] sm:$0x3] %vm359, %v378
    // Predicated region
    $region30: #{attentionblock_forward.3} parent=1 // pred_check
      _
    $region31: #{attentionblock_forward.3} parent=1 // pred_check_branch
      %381 = sbr.rel (0) target = $region33
    $region32: #{attentionblock_forward.3} parent=1 // pred_region
      %s383 = ssub.s32 32, 32
      %384 = vsyncadd [#allocation4], %s383
      %s386 = sshll.u32 [#allocation3], 4
      %s387 = int_to_ptr.vmem [resolvable:$true] %s386
      %389 = dma.vmem_to_hbm [thread:$0]  %s387, 32, %s7, [#allocation4]
    $region33: #{attentionblock_forward.3} parent=1 // pred_fallthru
      _
    // Predicated region
    $region34: #{attentionblock_forward.3} parent=1 // pred_check
      _
    $region35: #{attentionblock_forward.3} parent=1 // pred_check_branch
      %391 = sbr.rel (0) target = $region37
    $region36: #{attentionblock_forward.3} parent=1 // pred_region
      %392 = dma.done [#allocation4], 32
    $region37: #{attentionblock_forward.3} parent=1 // pred_fallthru
      _
    %393 = vsyncpa [#allocation4], 1

// kernel: attentionblock_forward.2
$region0: #{attentionblock_forward.2}
  #allocation0 [shape = 'u32[]', space=smem, size = 0x4, offset = 0x4, fixed_abs, tag = 'smem constant byte address 0x4 - core index']
  #allocation1 [shape = 'u32[144,128]{1,0:T(1,128)}', space=vmem, size = 0x12000, scoped, tag = 'internal scratch']
  #allocation2 [shape = 'f32[8,8192]{1,0:T(8,128)}', space=vmem, size = 0x40000, scoped, tag = 'scratch operand']
  #allocation3 [shape = 'f32[8,8192]{1,0:T(8,128)}', space=vmem, size = 0x40000, scoped, tag = 'scratch operand']
  #allocation4 [shape = 'f32[8,8192]{1,0:T(8,128)}', space=vmem, size = 0x40000, scoped, tag = 'scratch operand']
  %s0 = inlined_call_operand.vmem [shape: f32[8,8192], index: 0, kind: input, shape index: {}]
  %s1 = inlined_call_operand.vmem [shape: f32[8,8192], index: 1, kind: input, shape index: {}]
  %s2 = inlined_call_operand.vmem [shape: f32[8,8192], index: 2, kind: input, shape index: {}]
  %s3 = inlined_call_operand.vmem [shape: f32[1,3,8,1], index: 3, kind: output, shape index: {}]
  %s4 = sld [smem:[#allocation0]]
  $region30: #{attentionblock_forward.2} parent=0
    _
  %s6 = ssub.s32 1, %s4
  %s7 = scalar_select 0, %s6, %s4
  // Predicated region
  $region2: #{attentionblock_forward.2} parent=0 // pred_check
    _
  $region3: #{attentionblock_forward.2} parent=0 // pred_check_branch
    %9 = sbr.rel (0) target = $region5
  $region4: #{attentionblock_forward.2} parent=0 // pred_region
    %s10 = sadd.s32 0, 0
    %s11 = smul.u32 64, %s10
    %p12 = scmp.lt.s32.totalorder %s11, 63
    %s13 = scalar_select %p12, %s11, 63
    %s14 = smul.addr %s13, 8
    %s15 = scalar_lea.vmem %s0, %s14
    %s16 = sadd.s32 0, 0
    %s17 = smul.u32 64, %s16
  $region5: #{attentionblock_forward.2} parent=0 // pred_fallthru
    _
  // Predicated region
  $region6: #{attentionblock_forward.2} parent=0 // pred_check
    _
  $region7: #{attentionblock_forward.2} parent=0 // pred_check_branch
    %19 = sbr.rel (0) target = $region9
  $region8: #{attentionblock_forward.2} parent=0 // pred_region
    %s20 = sadd.s32 0, 0
    %s21 = smul.u32 64, %s20
    %p22 = scmp.lt.s32.totalorder %s21, 63
    %s23 = scalar_select %p22, %s21, 63
    %s24 = smul.addr %s23, 8
    %s25 = scalar_lea.vmem %s1, %s24
    %s26 = sadd.s32 0, 0
    %s27 = smul.u32 64, %s26
  $region9: #{attentionblock_forward.2} parent=0 // pred_fallthru
    _
  // Predicated region
  $region10: #{attentionblock_forward.2} parent=0 // pred_check
    _
  $region11: #{attentionblock_forward.2} parent=0 // pred_check_branch
    %29 = sbr.rel (0) target = $region13
  $region12: #{attentionblock_forward.2} parent=0 // pred_region
    %s30 = sadd.s32 0, 0
    %s31 = smul.u32 64, %s30
    %p32 = scmp.lt.s32.totalorder %s31, 63
    %s33 = scalar_select %p32, %s31, 63
    %s34 = smul.addr %s33, 8
    %s35 = scalar_lea.vmem %s2, %s34
    %s36 = sadd.s32 0, 0
    %s37 = smul.u32 64, %s36
  $region13: #{attentionblock_forward.2} parent=0 // pred_fallthru
    _
  %s38 = sadd.s32 0, 0
  %s39 = smul.u32 64, %s38
  %p40 = scmp.lt.s32.totalorder %s39, 63
  %s41 = scalar_select %p40, %s39, 63
  %s42 = smul.addr %s41, 8
  %s43 = scalar_lea.vmem %s0, %s42
  %s44 = sadd.s32 0, 0
  %s45 = smul.u32 64, %s44
  %p46 = scmp.lt.s32.totalorder %s45, 63
  %s47 = scalar_select %p46, %s45, 63
  %s48 = smul.addr %s47, 8
  %s49 = scalar_lea.vmem %s1, %s48
  %s50 = sadd.s32 0, 0
  %s51 = smul.u32 64, %s50
  %p52 = scmp.lt.s32.totalorder %s51, 63
  %s53 = scalar_select %p52, %s51, 63
  %s54 = smul.addr %s53, 8
  %s55 = scalar_lea.vmem %s2, %s54
  %s56 = sadd.s32 0, 0
  %s57 = smul.u32 64, %s56
  %p58 = scmp.lt.s32.totalorder %s57, 63
  %s59 = scalar_select %p58, %s57, 63
  %s60 = smul.addr %s59, 8
  %s61 = scalar_lea.vmem %s0, %s60
  %s62 = sadd.s32 0, 0
  %s63 = smul.u32 64, %s62
  %s64 = sadd.s32 0, 0
  %s65 = smul.u32 64, %s64
  %p66 = scmp.lt.s32.totalorder %s65, 63
  %s67 = scalar_select %p66, %s65, 63
  %s68 = smul.addr %s67, 8
  %s69 = scalar_lea.vmem %s1, %s68
  %s70 = sadd.s32 0, 0
  %s71 = smul.u32 64, %s70
  %s72 = sadd.s32 0, 0
  %s73 = smul.u32 64, %s72
  %p74 = scmp.lt.s32.totalorder %s73, 63
  %s75 = scalar_select %p74, %s73, 63
  %s76 = smul.addr %s75, 8
  %s77 = scalar_lea.vmem %s2, %s76
  %s78 = sadd.s32 0, 0
  %s79 = smul.u32 64, %s78
  %p80 = scmp.eq.s32.totalorder 0, 0
  // Predicated region
  $region14: #{attentionblock_forward.2} parent=0 // pred_check
    %p81 = pneg %p80
  $region15: #{attentionblock_forward.2} parent=0 // pred_check_branch
    %83 = sbr.rel (%p81) target = $region17
  $region16: #{attentionblock_forward.2} parent=0 // pred_region
    %84 = vst [vmem:[#allocation2] sm:$0xff] -inf
    %85 = vst [vmem:[#allocation2 + $0x8] sm:$0xff] -inf
    %86 = vst [vmem:[#allocation2 + $0x10] sm:$0xff] -inf
    %87 = vst [vmem:[#allocation2 + $0x18] sm:$0xff] -inf
    %88 = vst [vmem:[#allocation2 + $0x20] sm:$0xff] -inf
    %89 = vst [vmem:[#allocation2 + $0x28] sm:$0xff] -inf
    %90 = vst [vmem:[#allocation2 + $0x30] sm:$0xff] -inf
    %91 = vst [vmem:[#allocation2 + $0x38] sm:$0xff] -inf
    %92 = vst [vmem:[#allocation2 + $0x40] sm:$0xff] -inf
    %93 = vst [vmem:[#allocation2 + $0x48] sm:$0xff] -inf
    %94 = vst [vmem:[#allocation2 + $0x50] sm:$0xff] -inf
    %95 = vst [vmem:[#allocation2 + $0x58] sm:$0xff] -inf
    %96 = vst [vmem:[#allocation2 + $0x60] sm:$0xff] -inf
    %97 = vst [vmem:[#allocation2 + $0x68] sm:$0xff] -inf
    %98 = vst [vmem:[#allocation2 + $0x70] sm:$0xff] -inf
    %99 = vst [vmem:[#allocation2 + $0x78] sm:$0xff] -inf
    %100 = vst [vmem:[#allocation2 + $0x80] sm:$0xff] -inf
    %101 = vst [vmem:[#allocation2 + $0x88] sm:$0xff] -inf
    %102 = vst [vmem:[#allocation2 + $0x90] sm:$0xff] -inf
    %103 = vst [vmem:[#allocation2 + $0x98] sm:$0xff] -inf
    %104 = vst [vmem:[#allocation2 + $0xa0] sm:$0xff] -inf
    %105 = vst [vmem:[#allocation2 + $0xa8] sm:$0xff] -inf
    %106 = vst [vmem:[#allocation2 + $0xb0] sm:$0xff] -inf
    %107 = vst [vmem:[#allocation2 + $0xb8] sm:$0xff] -inf
    %108 = vst [vmem:[#allocation2 + $0xc0] sm:$0xff] -inf
    %109 = vst [vmem:[#allocation2 + $0xc8] sm:$0xff] -inf
    %110 = vst [vmem:[#allocation2 + $0xd0] sm:$0xff] -inf
    %111 = vst [vmem:[#allocation2 + $0xd8] sm:$0xff] -inf
    %112 = vst [vmem:[#allocation2 + $0xe0] sm:$0xff] -inf
    %113 = vst [vmem:[#allocation2 + $0xe8] sm:$0xff] -inf
    %114 = vst [vmem:[#allocation2 + $0xf0] sm:$0xff] -inf
    %115 = vst [vmem:[#allocation2 + $0xf8] sm:$0xff] -inf
    %116 = vst [vmem:[#allocation2 + $0x100] sm:$0xff] -inf
    %117 = vst [vmem:[#allocation2 + $0x108] sm:$0xff] -inf
    %118 = vst [vmem:[#allocation2 + $0x110] sm:$0xff] -inf
    %119 = vst [vmem:[#allocation2 + $0x118] sm:$0xff] -inf
    %120 = vst [vmem:[#allocation2 + $0x120] sm:$0xff] -inf
    %121 = vst [vmem:[#allocation2 + $0x128] sm:$0xff] -inf
    %122 = vst [vmem:[#allocation2 + $0x130] sm:$0xff] -inf
    %123 = vst [vmem:[#allocation2 + $0x138] sm:$0xff] -inf
    %124 = vst [vmem:[#allocation2 + $0x140] sm:$0xff] -inf
    %125 = vst [vmem:[#allocation2 + $0x148] sm:$0xff] -inf
    %126 = vst [vmem:[#allocation2 + $0x150] sm:$0xff] -inf
    %127 = vst [vmem:[#allocation2 + $0x158] sm:$0xff] -inf
    %128 = vst [vmem:[#allocation2 + $0x160] sm:$0xff] -inf
    %129 = vst [vmem:[#allocation2 + $0x168] sm:$0xff] -inf
    %130 = vst [vmem:[#allocation2 + $0x170] sm:$0xff] -inf
    %131 = vst [vmem:[#allocation2 + $0x178] sm:$0xff] -inf
    %132 = vst [vmem:[#allocation2 + $0x180] sm:$0xff] -inf
    %133 = vst [vmem:[#allocation2 + $0x188] sm:$0xff] -inf
    %134 = vst [vmem:[#allocation2 + $0x190] sm:$0xff] -inf
    %135 = vst [vmem:[#allocation2 + $0x198] sm:$0xff] -inf
    %136 = vst [vmem:[#allocation2 + $0x1a0] sm:$0xff] -inf
    %137 = vst [vmem:[#allocation2 + $0x1a8] sm:$0xff] -inf
    %138 = vst [vmem:[#allocation2 + $0x1b0] sm:$0xff] -inf
    %139 = vst [vmem:[#allocation2 + $0x1b8] sm:$0xff] -inf
    %140 = vst [vmem:[#allocation2 + $0x1c0] sm:$0xff] -inf
    %141 = vst [vmem:[#allocation2 + $0x1c8] sm:$0xff] -inf
    %142 = vst [vmem:[#allocation2 + $0x1d0] sm:$0xff] -inf
    %143 = vst [vmem:[#allocation2 + $0x1d8] sm:$0xff] -inf
    %144 = vst [vmem:[#allocation2 + $0x1e0] sm:$0xff] -inf
    %145 = vst [vmem:[#allocation2 + $0x1e8] sm:$0xff] -inf
    %146 = vst [vmem:[#allocation2 + $0x1f0] sm:$0xff] -inf
    %147 = vst [vmem:[#allocation2 + $0x1f8] sm:$0xff] -inf
    %148 = vst [vmem:[#allocation3] sm:$0xff] -inf
    %149 = vst [vmem:[#allocation3 + $0x8] sm:$0xff] -inf
    %150 = vst [vmem:[#allocation3 + $0x10] sm:$0xff] -inf
    %151 = vst [vmem:[#allocation3 + $0x18] sm:$0xff] -inf
    %152 = vst [vmem:[#allocation3 + $0x20] sm:$0xff] -inf
    %153 = vst [vmem:[#allocation3 + $0x28] sm:$0xff] -inf
    %154 = vst [vmem:[#allocation3 + $0x30] sm:$0xff] -inf
    %155 = vst [vmem:[#allocation3 + $0x38] sm:$0xff] -inf
    %156 = vst [vmem:[#allocation3 + $0x40] sm:$0xff] -inf
    %157 = vst [vmem:[#allocation3 + $0x48] sm:$0xff] -inf
    %158 = vst [vmem:[#allocation3 + $0x50] sm:$0xff] -inf
    %159 = vst [vmem:[#allocation3 + $0x58] sm:$0xff] -inf
    %160 = vst [vmem:[#allocation3 + $0x60] sm:$0xff] -inf
    %161 = vst [vmem:[#allocation3 + $0x68] sm:$0xff] -inf
    %162 = vst [vmem:[#allocation3 + $0x70] sm:$0xff] -inf
    %163 = vst [vmem:[#allocation3 + $0x78] sm:$0xff] -inf
    %164 = vst [vmem:[#allocation3 + $0x80] sm:$0xff] -inf
    %165 = vst [vmem:[#allocation3 + $0x88] sm:$0xff] -inf
    %166 = vst [vmem:[#allocation3 + $0x90] sm:$0xff] -inf
    %167 = vst [vmem:[#allocation3 + $0x98] sm:$0xff] -inf
    %168 = vst [vmem:[#allocation3 + $0xa0] sm:$0xff] -inf
    %169 = vst [vmem:[#allocation3 + $0xa8] sm:$0xff] -inf
    %170 = vst [vmem:[#allocation3 + $0xb0] sm:$0xff] -inf
    %171 = vst [vmem:[#allocation3 + $0xb8] sm:$0xff] -inf
    %172 = vst [vmem:[#allocation3 + $0xc0] sm:$0xff] -inf
    %173 = vst [vmem:[#allocation3 + $0xc8] sm:$0xff] -inf
    %174 = vst [vmem:[#allocation3 + $0xd0] sm:$0xff] -inf
    %175 = vst [vmem:[#allocation3 + $0xd8] sm:$0xff] -inf
    %176 = vst [vmem:[#allocation3 + $0xe0] sm:$0xff] -inf
    %177 = vst [vmem:[#allocation3 + $0xe8] sm:$0xff] -inf
    %178 = vst [vmem:[#allocation3 + $0xf0] sm:$0xff] -inf
    %179 = vst [vmem:[#allocation3 + $0xf8] sm:$0xff] -inf
    %180 = vst [vmem:[#allocation3 + $0x100] sm:$0xff] -inf
    %181 = vst [vmem:[#allocation3 + $0x108] sm:$0xff] -inf
    %182 = vst [vmem:[#allocation3 + $0x110] sm:$0xff] -inf
    %183 = vst [vmem:[#allocation3 + $0x118] sm:$0xff] -inf
    %184 = vst [vmem:[#allocation3 + $0x120] sm:$0xff] -inf
    %185 = vst [vmem:[#allocation3 + $0x128] sm:$0xff] -inf
    %186 = vst [vmem:[#allocation3 + $0x130] sm:$0xff] -inf
    %187 = vst [vmem:[#allocation3 + $0x138] sm:$0xff] -inf
    %188 = vst [vmem:[#allocation3 + $0x140] sm:$0xff] -inf
    %189 = vst [vmem:[#allocation3 + $0x148] sm:$0xff] -inf
    %190 = vst [vmem:[#allocation3 + $0x150] sm:$0xff] -inf
    %191 = vst [vmem:[#allocation3 + $0x158] sm:$0xff] -inf
    %192 = vst [vmem:[#allocation3 + $0x160] sm:$0xff] -inf
    %193 = vst [vmem:[#allocation3 + $0x168] sm:$0xff] -inf
    %194 = vst [vmem:[#allocation3 + $0x170] sm:$0xff] -inf
    %195 = vst [vmem:[#allocation3 + $0x178] sm:$0xff] -inf
    %196 = vst [vmem:[#allocation3 + $0x180] sm:$0xff] -inf
    %197 = vst [vmem:[#allocation3 + $0x188] sm:$0xff] -inf
    %198 = vst [vmem:[#allocation3 + $0x190] sm:$0xff] -inf
    %199 = vst [vmem:[#allocation3 + $0x198] sm:$0xff] -inf
    %200 = vst [vmem:[#allocation3 + $0x1a0] sm:$0xff] -inf
    %201 = vst [vmem:[#allocation3 + $0x1a8] sm:$0xff] -inf
    %202 = vst [vmem:[#allocation3 + $0x1b0] sm:$0xff] -inf
    %203 = vst [vmem:[#allocation3 + $0x1b8] sm:$0xff] -inf
    %204 = vst [vmem:[#allocation3 + $0x1c0] sm:$0xff] -inf
    %205 = vst [vmem:[#allocation3 + $0x1c8] sm:$0xff] -inf
    %206 = vst [vmem:[#allocation3 + $0x1d0] sm:$0xff] -inf
    %207 = vst [vmem:[#allocation3 + $0x1d8] sm:$0xff] -inf
    %208 = vst [vmem:[#allocation3 + $0x1e0] sm:$0xff] -inf
    %209 = vst [vmem:[#allocation3 + $0x1e8] sm:$0xff] -inf
    %210 = vst [vmem:[#allocation3 + $0x1f0] sm:$0xff] -inf
    %211 = vst [vmem:[#allocation3 + $0x1f8] sm:$0xff] -inf
    %212 = vst [vmem:[#allocation4] sm:$0xff] -inf
    %213 = vst [vmem:[#allocation4 + $0x8] sm:$0xff] -inf
    %214 = vst [vmem:[#allocation4 + $0x10] sm:$0xff] -inf
    %215 = vst [vmem:[#allocation4 + $0x18] sm:$0xff] -inf
    %216 = vst [vmem:[#allocation4 + $0x20] sm:$0xff] -inf
    %217 = vst [vmem:[#allocation4 + $0x28] sm:$0xff] -inf
    %218 = vst [vmem:[#allocation4 + $0x30] sm:$0xff] -inf
    %219 = vst [vmem:[#allocation4 + $0x38] sm:$0xff] -inf
    %220 = vst [vmem:[#allocation4 + $0x40] sm:$0xff] -inf
    %221 = vst [vmem:[#allocation4 + $0x48] sm:$0xff] -inf
    %222 = vst [vmem:[#allocation4 + $0x50] sm:$0xff] -inf
    %223 = vst [vmem:[#allocation4 + $0x58] sm:$0xff] -inf
    %224 = vst [vmem:[#allocation4 + $0x60] sm:$0xff] -inf
    %225 = vst [vmem:[#allocation4 + $0x68] sm:$0xff] -inf
    %226 = vst [vmem:[#allocation4 + $0x70] sm:$0xff] -inf
    %227 = vst [vmem:[#allocation4 + $0x78] sm:$0xff] -inf
    %228 = vst [vmem:[#allocation4 + $0x80] sm:$0xff] -inf
    %229 = vst [vmem:[#allocation4 + $0x88] sm:$0xff] -inf
    %230 = vst [vmem:[#allocation4 + $0x90] sm:$0xff] -inf
    %231 = vst [vmem:[#allocation4 + $0x98] sm:$0xff] -inf
    %232 = vst [vmem:[#allocation4 + $0xa0] sm:$0xff] -inf
    %233 = vst [vmem:[#allocation4 + $0xa8] sm:$0xff] -inf
    %234 = vst [vmem:[#allocation4 + $0xb0] sm:$0xff] -inf
    %235 = vst [vmem:[#allocation4 + $0xb8] sm:$0xff] -inf
    %236 = vst [vmem:[#allocation4 + $0xc0] sm:$0xff] -inf
    %237 = vst [vmem:[#allocation4 + $0xc8] sm:$0xff] -inf
    %238 = vst [vmem:[#allocation4 + $0xd0] sm:$0xff] -inf
    %239 = vst [vmem:[#allocation4 + $0xd8] sm:$0xff] -inf
    %240 = vst [vmem:[#allocation4 + $0xe0] sm:$0xff] -inf
    %241 = vst [vmem:[#allocation4 + $0xe8] sm:$0xff] -inf
    %242 = vst [vmem:[#allocation4 + $0xf0] sm:$0xff] -inf
    %243 = vst [vmem:[#allocation4 + $0xf8] sm:$0xff] -inf
    %244 = vst [vmem:[#allocation4 + $0x100] sm:$0xff] -inf
    %245 = vst [vmem:[#allocation4 + $0x108] sm:$0xff] -inf
    %246 = vst [vmem:[#allocation4 + $0x110] sm:$0xff] -inf
    %247 = vst [vmem:[#allocation4 + $0x118] sm:$0xff] -inf
    %248 = vst [vmem:[#allocation4 + $0x120] sm:$0xff] -inf
    %249 = vst [vmem:[#allocation4 + $0x128] sm:$0xff] -inf
    %250 = vst [vmem:[#allocation4 + $0x130] sm:$0xff] -inf
    %251 = vst [vmem:[#allocation4 + $0x138] sm:$0xff] -inf
    %252 = vst [vmem:[#allocation4 + $0x140] sm:$0xff] -inf
    %253 = vst [vmem:[#allocation4 + $0x148] sm:$0xff] -inf
    %254 = vst [vmem:[#allocation4 + $0x150] sm:$0xff] -inf
    %255 = vst [vmem:[#allocation4 + $0x158] sm:$0xff] -inf
    %256 = vst [vmem:[#allocation4 + $0x160] sm:$0xff] -inf
    %257 = vst [vmem:[#allocation4 + $0x168] sm:$0xff] -inf
    %258 = vst [vmem:[#allocation4 + $0x170] sm:$0xff] -inf
    %259 = vst [vmem:[#allocation4 + $0x178] sm:$0xff] -inf
    %260 = vst [vmem:[#allocation4 + $0x180] sm:$0xff] -inf
    %261 = vst [vmem:[#allocation4 + $0x188] sm:$0xff] -inf
    %262 = vst [vmem:[#allocation4 + $0x190] sm:$0xff] -inf
    %263 = vst [vmem:[#allocation4 + $0x198] sm:$0xff] -inf
    %264 = vst [vmem:[#allocation4 + $0x1a0] sm:$0xff] -inf
    %265 = vst [vmem:[#allocation4 + $0x1a8] sm:$0xff] -inf
    %266 = vst [vmem:[#allocation4 + $0x1b0] sm:$0xff] -inf
    %267 = vst [vmem:[#allocation4 + $0x1b8] sm:$0xff] -inf
    %268 = vst [vmem:[#allocation4 + $0x1c0] sm:$0xff] -inf
    %269 = vst [vmem:[#allocation4 + $0x1c8] sm:$0xff] -inf
    %270 = vst [vmem:[#allocation4 + $0x1d0] sm:$0xff] -inf
    %271 = vst [vmem:[#allocation4 + $0x1d8] sm:$0xff] -inf
    %272 = vst [vmem:[#allocation4 + $0x1e0] sm:$0xff] -inf
    %273 = vst [vmem:[#allocation4 + $0x1e8] sm:$0xff] -inf
    %274 = vst [vmem:[#allocation4 + $0x1f0] sm:$0xff] -inf
    %275 = vst [vmem:[#allocation4 + $0x1f8] sm:$0xff] -inf
  $region17: #{attentionblock_forward.2} parent=0 // pred_fallthru
    _
  %v276 = vld [vmem:[%s61] sm:$0xff]
  %v277 = vld [vmem:[%s61 + $0x8] sm:$0xff]
  %v278 = vld [vmem:[%s61 + $0x10] sm:$0xff]
  %v279 = vld [vmem:[%s61 + $0x18] sm:$0xff]
  %v280 = vld [vmem:[%s61 + $0x20] sm:$0xff]
  %v281 = vld [vmem:[%s61 + $0x28] sm:$0xff]
  %v282 = vld [vmem:[%s61 + $0x30] sm:$0xff]
  %v283 = vld [vmem:[%s61 + $0x38] sm:$0xff]
  %v284 = vld [vmem:[%s61 + $0x40] sm:$0xff]
  %v285 = vld [vmem:[%s61 + $0x48] sm:$0xff]
  %v286 = vld [vmem:[%s61 + $0x50] sm:$0xff]
  %v287 = vld [vmem:[%s61 + $0x58] sm:$0xff]
  %v288 = vld [vmem:[%s61 + $0x60] sm:$0xff]
  %v289 = vld [vmem:[%s61 + $0x68] sm:$0xff]
  %v290 = vld [vmem:[%s61 + $0x70] sm:$0xff]
  %v291 = vld [vmem:[%s61 + $0x78] sm:$0xff]
  %v292 = vld [vmem:[%s61 + $0x80] sm:$0xff]
  %v293 = vld [vmem:[%s61 + $0x88] sm:$0xff]
  %v294 = vld [vmem:[%s61 + $0x90] sm:$0xff]
  %v295 = vld [vmem:[%s61 + $0x98] sm:$0xff]
  %v296 = vld [vmem:[%s61 + $0xa0] sm:$0xff]
  %v297 = vld [vmem:[%s61 + $0xa8] sm:$0xff]
  %v298 = vld [vmem:[%s61 + $0xb0] sm:$0xff]
  %v299 = vld [vmem:[%s61 + $0xb8] sm:$0xff]
  %v300 = vld [vmem:[%s61 + $0xc0] sm:$0xff]
  %v301 = vld [vmem:[%s61 + $0xc8] sm:$0xff]
  %v302 = vld [vmem:[%s61 + $0xd0] sm:$0xff]
  %v303 = vld [vmem:[%s61 + $0xd8] sm:$0xff]
  %v304 = vld [vmem:[%s61 + $0xe0] sm:$0xff]
  %v305 = vld [vmem:[%s61 + $0xe8] sm:$0xff]
  %v306 = vld [vmem:[%s61 + $0xf0] sm:$0xff]
  %v307 = vld [vmem:[%s61 + $0xf8] sm:$0xff]
  %v308 = vld [vmem:[%s61 + $0x100] sm:$0xff]
  %v309 = vld [vmem:[%s61 + $0x108] sm:$0xff]
  %v310 = vld [vmem:[%s61 + $0x110] sm:$0xff]
  %v311 = vld [vmem:[%s61 + $0x118] sm:$0xff]
  %v312 = vld [vmem:[%s61 + $0x120] sm:$0xff]
  %v313 = vld [vmem:[%s61 + $0x128] sm:$0xff]
  %v314 = vld [vmem:[%s61 + $0x130] sm:$0xff]
  %v315 = vld [vmem:[%s61 + $0x138] sm:$0xff]
  %v316 = vld [vmem:[%s61 + $0x140] sm:$0xff]
  %v317 = vld [vmem:[%s61 + $0x148] sm:$0xff]
  %v318 = vld [vmem:[%s61 + $0x150] sm:$0xff]
  %v319 = vld [vmem:[%s61 + $0x158] sm:$0xff]
  %v320 = vld [vmem:[%s61 + $0x160] sm:$0xff]
  %v321 = vld [vmem:[%s61 + $0x168] sm:$0xff]
  %v322 = vld [vmem:[%s61 + $0x170] sm:$0xff]
  %v323 = vld [vmem:[%s61 + $0x178] sm:$0xff]
  %v324 = vld [vmem:[%s61 + $0x180] sm:$0xff]
  %v325 = vld [vmem:[%s61 + $0x188] sm:$0xff]
  %v326 = vld [vmem:[%s61 + $0x190] sm:$0xff]
  %v327 = vld [vmem:[%s61 + $0x198] sm:$0xff]
  %v328 = vld [vmem:[%s61 + $0x1a0] sm:$0xff]
  %v329 = vld [vmem:[%s61 + $0x1a8] sm:$0xff]
  %v330 = vld [vmem:[%s61 + $0x1b0] sm:$0xff]
  %v331 = vld [vmem:[%s61 + $0x1b8] sm:$0xff]
  %v332 = vld [vmem:[%s61 + $0x1c0] sm:$0xff]
  %v333 = vld [vmem:[%s61 + $0x1c8] sm:$0xff]
  %v334 = vld [vmem:[%s61 + $0x1d0] sm:$0xff]
  %v335 = vld [vmem:[%s61 + $0x1d8] sm:$0xff]
  %v336 = vld [vmem:[%s61 + $0x1e0] sm:$0xff]
  %v337 = vld [vmem:[%s61 + $0x1e8] sm:$0xff]
  %v338 = vld [vmem:[%s61 + $0x1f0] sm:$0xff]
  %v339 = vld [vmem:[%s61 + $0x1f8] sm:$0xff]
  %v340 = vld [vmem:[%s69] sm:$0xff]
  %v341 = vld [vmem:[%s69 + $0x8] sm:$0xff]
  %v342 = vld [vmem:[%s69 + $0x10] sm:$0xff]
  %v343 = vld [vmem:[%s69 + $0x18] sm:$0xff]
  %v344 = vld [vmem:[%s69 + $0x20] sm:$0xff]
  %v345 = vld [vmem:[%s69 + $0x28] sm:$0xff]
  %v346 = vld [vmem:[%s69 + $0x30] sm:$0xff]
  %v347 = vld [vmem:[%s69 + $0x38] sm:$0xff]
  %v348 = vld [vmem:[%s69 + $0x40] sm:$0xff]
  %v349 = vld [vmem:[%s69 + $0x48] sm:$0xff]
  %v350 = vld [vmem:[%s69 + $0x50] sm:$0xff]
  %v351 = vld [vmem:[%s69 + $0x58] sm:$0xff]
  %v352 = vld [vmem:[%s69 + $0x60] sm:$0xff]
  %v353 = vld [vmem:[%s69 + $0x68] sm:$0xff]
  %v354 = vld [vmem:[%s69 + $0x70] sm:$0xff]
  %v355 = vld [vmem:[%s69 + $0x78] sm:$0xff]
  %v356 = vld [vmem:[%s69 + $0x80] sm:$0xff]
  %v357 = vld [vmem:[%s69 + $0x88] sm:$0xff]
  %v358 = vld [vmem:[%s69 + $0x90] sm:$0xff]
  %v359 = vld [vmem:[%s69 + $0x98] sm:$0xff]
  %v360 = vld [vmem:[%s69 + $0xa0] sm:$0xff]
  %v361 = vld [vmem:[%s69 + $0xa8] sm:$0xff]
  %v362 = vld [vmem:[%s69 + $0xb0] sm:$0xff]
  %v363 = vld [vmem:[%s69 + $0xb8] sm:$0xff]
  %v364 = vld [vmem:[%s69 + $0xc0] sm:$0xff]
  %v365 = vld [vmem:[%s69 + $0xc8] sm:$0xff]
  %v366 = vld [vmem:[%s69 + $0xd0] sm:$0xff]
  %v367 = vld [vmem:[%s69 + $0xd8] sm:$0xff]
  %v368 = vld [vmem:[%s69 + $0xe0] sm:$0xff]
  %v369 = vld [vmem:[%s69 + $0xe8] sm:$0xff]
  %v370 = vld [vmem:[%s69 + $0xf0] sm:$0xff]
  %v371 = vld [vmem:[%s69 + $0xf8] sm:$0xff]
  %v372 = vld [vmem:[%s69 + $0x100] sm:$0xff]
  %v373 = vld [vmem:[%s69 + $0x108] sm:$0xff]
  %v374 = vld [vmem:[%s69 + $0x110] sm:$0xff]
  %v375 = vld [vmem:[%s69 + $0x118] sm:$0xff]
  %v376 = vld [vmem:[%s69 + $0x120] sm:$0xff]
  %v377 = vld [vmem:[%s69 + $0x128] sm:$0xff]
  %v378 = vld [vmem:[%s69 + $0x130] sm:$0xff]
  %v379 = vld [vmem:[%s69 + $0x138] sm:$0xff]
  %v380 = vld [vmem:[%s69 + $0x140] sm:$0xff]
  %v381 = vld [vmem:[%s69 + $0x148] sm:$0xff]
  %v382 = vld [vmem:[%s69 + $0x150] sm:$0xff]
  %v383 = vld [vmem:[%s69 + $0x158] sm:$0xff]
  %v384 = vld [vmem:[%s69 + $0x160] sm:$0xff]
  %v385 = vld [vmem:[%s69 + $0x168] sm:$0xff]
  %v386 = vld [vmem:[%s69 + $0x170] sm:$0xff]
  %v387 = vld [vmem:[%s69 + $0x178] sm:$0xff]
  %v388 = vld [vmem:[%s69 + $0x180] sm:$0xff]
  %v389 = vld [vmem:[%s69 + $0x188] sm:$0xff]
  %v390 = vld [vmem:[%s69 + $0x190] sm:$0xff]
  %v391 = vld [vmem:[%s69 + $0x198] sm:$0xff]
  %v392 = vld [vmem:[%s69 + $0x1a0] sm:$0xff]
  %v393 = vld [vmem:[%s69 + $0x1a8] sm:$0xff]
  %v394 = vld [vmem:[%s69 + $0x1b0] sm:$0xff]
  %v395 = vld [vmem:[%s69 + $0x1b8] sm:$0xff]
  %v396 = vld [vmem:[%s69 + $0x1c0] sm:$0xff]
  %v397 = vld [vmem:[%s69 + $0x1c8] sm:$0xff]
  %v398 = vld [vmem:[%s69 + $0x1d0] sm:$0xff]
  %v399 = vld [vmem:[%s69 + $0x1d8] sm:$0xff]
  %v400 = vld [vmem:[%s69 + $0x1e0] sm:$0xff]
  %v401 = vld [vmem:[%s69 + $0x1e8] sm:$0xff]
  %v402 = vld [vmem:[%s69 + $0x1f0] sm:$0xff]
  %v403 = vld [vmem:[%s69 + $0x1f8] sm:$0xff]
  %v404 = vld [vmem:[%s77] sm:$0xff]
  %v405 = vld [vmem:[%s77 + $0x8] sm:$0xff]
  %v406 = vld [vmem:[%s77 + $0x10] sm:$0xff]
  %v407 = vld [vmem:[%s77 + $0x18] sm:$0xff]
  %v408 = vld [vmem:[%s77 + $0x20] sm:$0xff]
  %v409 = vld [vmem:[%s77 + $0x28] sm:$0xff]
  %v410 = vld [vmem:[%s77 + $0x30] sm:$0xff]
  %v411 = vld [vmem:[%s77 + $0x38] sm:$0xff]
  %v412 = vld [vmem:[%s77 + $0x40] sm:$0xff]
  %v413 = vld [vmem:[%s77 + $0x48] sm:$0xff]
  %v414 = vld [vmem:[%s77 + $0x50] sm:$0xff]
  %v415 = vld [vmem:[%s77 + $0x58] sm:$0xff]
  %v416 = vld [vmem:[%s77 + $0x60] sm:$0xff]
  %v417 = vld [vmem:[%s77 + $0x68] sm:$0xff]
  %v418 = vld [vmem:[%s77 + $0x70] sm:$0xff]
  %v419 = vld [vmem:[%s77 + $0x78] sm:$0xff]
  %v420 = vld [vmem:[%s77 + $0x80] sm:$0xff]
  %v421 = vld [vmem:[%s77 + $0x88] sm:$0xff]
  %v422 = vld [vmem:[%s77 + $0x90] sm:$0xff]
  %v423 = vld [vmem:[%s77 + $0x98] sm:$0xff]
  %v424 = vld [vmem:[%s77 + $0xa0] sm:$0xff]
  %v425 = vld [vmem:[%s77 + $0xa8] sm:$0xff]
  %v426 = vld [vmem:[%s77 + $0xb0] sm:$0xff]
  %v427 = vld [vmem:[%s77 + $0xb8] sm:$0xff]
  %v428 = vld [vmem:[%s77 + $0xc0] sm:$0xff]
  %v429 = vld [vmem:[%s77 + $0xc8] sm:$0xff]
  %v430 = vld [vmem:[%s77 + $0xd0] sm:$0xff]
  %v431 = vld [vmem:[%s77 + $0xd8] sm:$0xff]
  %v432 = vld [vmem:[%s77 + $0xe0] sm:$0xff]
  %v433 = vld [vmem:[%s77 + $0xe8] sm:$0xff]
  %v434 = vld [vmem:[%s77 + $0xf0] sm:$0xff]
  %v435 = vld [vmem:[%s77 + $0xf8] sm:$0xff]
  %v436 = vld [vmem:[%s77 + $0x100] sm:$0xff]
  %v437 = vld [vmem:[%s77 + $0x108] sm:$0xff]
  %v438 = vld [vmem:[%s77 + $0x110] sm:$0xff]
  %v439 = vld [vmem:[%s77 + $0x118] sm:$0xff]
  %v440 = vld [vmem:[%s77 + $0x120] sm:$0xff]
  %v441 = vld [vmem:[%s77 + $0x128] sm:$0xff]
  %v442 = vld [vmem:[%s77 + $0x130] sm:$0xff]
  %v443 = vld [vmem:[%s77 + $0x138] sm:$0xff]
  %v444 = vld [vmem:[%s77 + $0x140] sm:$0xff]
  %v445 = vld [vmem:[%s77 + $0x148] sm:$0xff]
  %v446 = vld [vmem:[%s77 + $0x150] sm:$0xff]
  %v447 = vld [vmem:[%s77 + $0x158] sm:$0xff]
  %v448 = vld [vmem:[%s77 + $0x160] sm:$0xff]
  %v449 = vld [vmem:[%s77 + $0x168] sm:$0xff]
  %v450 = vld [vmem:[%s77 + $0x170] sm:$0xff]
  %v451 = vld [vmem:[%s77 + $0x178] sm:$0xff]
  %v452 = vld [vmem:[%s77 + $0x180] sm:$0xff]
  %v453 = vld [vmem:[%s77 + $0x188] sm:$0xff]
  %v454 = vld [vmem:[%s77 + $0x190] sm:$0xff]
  %v455 = vld [vmem:[%s77 + $0x198] sm:$0xff]
  %v456 = vld [vmem:[%s77 + $0x1a0] sm:$0xff]
  %v457 = vld [vmem:[%s77 + $0x1a8] sm:$0xff]
  %v458 = vld [vmem:[%s77 + $0x1b0] sm:$0xff]
  %v459 = vld [vmem:[%s77 + $0x1b8] sm:$0xff]
  %v460 = vld [vmem:[%s77 + $0x1c0] sm:$0xff]
  %v461 = vld [vmem:[%s77 + $0x1c8] sm:$0xff]
  %v462 = vld [vmem:[%s77 + $0x1d0] sm:$0xff]
  %v463 = vld [vmem:[%s77 + $0x1d8] sm:$0xff]
  %v464 = vld [vmem:[%s77 + $0x1e0] sm:$0xff]
  %v465 = vld [vmem:[%s77 + $0x1e8] sm:$0xff]
  %v466 = vld [vmem:[%s77 + $0x1f0] sm:$0xff]
  %v467 = vld [vmem:[%s77 + $0x1f8] sm:$0xff]
  %v468 = vld [vmem:[#allocation2] sm:$0xff]
  %v469 = vld [vmem:[#allocation2 + $0x8] sm:$0xff]
  %v470 = vld [vmem:[#allocation2 + $0x10] sm:$0xff]
  %v471 = vld [vmem:[#allocation2 + $0x18] sm:$0xff]
  %v472 = vld [vmem:[#allocation2 + $0x20] sm:$0xff]
  %v473 = vld [vmem:[#allocation2 + $0x28] sm:$0xff]
  %v474 = vld [vmem:[#allocation2 + $0x30] sm:$0xff]
  %v475 = vld [vmem:[#allocation2 + $0x38] sm:$0xff]
  %v476 = vld [vmem:[#allocation2 + $0x40] sm:$0xff]
  %v477 = vld [vmem:[#allocation2 + $0x48] sm:$0xff]
  %v478 = vld [vmem:[#allocation2 + $0x50] sm:$0xff]
  %v479 = vld [vmem:[#allocation2 + $0x58] sm:$0xff]
  %v480 = vld [vmem:[#allocation2 + $0x60] sm:$0xff]
  %v481 = vld [vmem:[#allocation2 + $0x68] sm:$0xff]
  %v482 = vld [vmem:[#allocation2 + $0x70] sm:$0xff]
  %v483 = vld [vmem:[#allocation2 + $0x78] sm:$0xff]
  %v484 = vld [vmem:[#allocation2 + $0x80] sm:$0xff]
  %v485 = vld [vmem:[#allocation2 + $0x88] sm:$0xff]
  %v486 = vld [vmem:[#allocation2 + $0x90] sm:$0xff]
  %v487 = vld [vmem:[#allocation2 + $0x98] sm:$0xff]
  %v488 = vld [vmem:[#allocation2 + $0xa0] sm:$0xff]
  %v489 = vld [vmem:[#allocation2 + $0xa8] sm:$0xff]
  %v490 = vld [vmem:[#allocation2 + $0xb0] sm:$0xff]
  %v491 = vld [vmem:[#allocation2 + $0xb8] sm:$0xff]
  %v492 = vld [vmem:[#allocation2 + $0xc0] sm:$0xff]
  %v493 = vld [vmem:[#allocation2 + $0xc8] sm:$0xff]
  %v494 = vld [vmem:[#allocation2 + $0xd0] sm:$0xff]
  %v495 = vld [vmem:[#allocation2 + $0xd8] sm:$0xff]
  %v496 = vld [vmem:[#allocation2 + $0xe0] sm:$0xff]
  %v497 = vld [vmem:[#allocation2 + $0xe8] sm:$0xff]
  %v498 = vld [vmem:[#allocation2 + $0xf0] sm:$0xff]
  %v499 = vld [vmem:[#allocation2 + $0xf8] sm:$0xff]
  %v500 = vld [vmem:[#allocation2 + $0x100] sm:$0xff]
  %v501 = vld [vmem:[#allocation2 + $0x108] sm:$0xff]
  %v502 = vld [vmem:[#allocation2 + $0x110] sm:$0xff]
  %v503 = vld [vmem:[#allocation2 + $0x118] sm:$0xff]
  %v504 = vld [vmem:[#allocation2 + $0x120] sm:$0xff]
  %v505 = vld [vmem:[#allocation2 + $0x128] sm:$0xff]
  %v506 = vld [vmem:[#allocation2 + $0x130] sm:$0xff]
  %v507 = vld [vmem:[#allocation2 + $0x138] sm:$0xff]
  %v508 = vld [vmem:[#allocation2 + $0x140] sm:$0xff]
  %v509 = vld [vmem:[#allocation2 + $0x148] sm:$0xff]
  %v510 = vld [vmem:[#allocation2 + $0x150] sm:$0xff]
  %v511 = vld [vmem:[#allocation2 + $0x158] sm:$0xff]
  %v512 = vld [vmem:[#allocation2 + $0x160] sm:$0xff]
  %v513 = vld [vmem:[#allocation2 + $0x168] sm:$0xff]
  %v514 = vld [vmem:[#allocation2 + $0x170] sm:$0xff]
  %v515 = vld [vmem:[#allocation2 + $0x178] sm:$0xff]
  %v516 = vld [vmem:[#allocation2 + $0x180] sm:$0xff]
  %v517 = vld [vmem:[#allocation2 + $0x188] sm:$0xff]
  %v518 = vld [vmem:[#allocation2 + $0x190] sm:$0xff]
  %v519 = vld [vmem:[#allocation2 + $0x198] sm:$0xff]
  %v520 = vld [vmem:[#allocation2 + $0x1a0] sm:$0xff]
  %v521 = vld [vmem:[#allocation2 + $0x1a8] sm:$0xff]
  %v522 = vld [vmem:[#allocation2 + $0x1b0] sm:$0xff]
  %v523 = vld [vmem:[#allocation2 + $0x1b8] sm:$0xff]
  %v524 = vld [vmem:[#allocation2 + $0x1c0] sm:$0xff]
  %v525 = vld [vmem:[#allocation2 + $0x1c8] sm:$0xff]
  %v526 = vld [vmem:[#allocation2 + $0x1d0] sm:$0xff]
  %v527 = vld [vmem:[#allocation2 + $0x1d8] sm:$0xff]
  %v528 = vld [vmem:[#allocation2 + $0x1e0] sm:$0xff]
  %v529 = vld [vmem:[#allocation2 + $0x1e8] sm:$0xff]
  %v530 = vld [vmem:[#allocation2 + $0x1f0] sm:$0xff]
  %v531 = vld [vmem:[#allocation2 + $0x1f8] sm:$0xff]
  %v532 = vmax.f32 %v468, %v276
  %v533 = vmax.f32 %v469, %v277
  %v534 = vmax.f32 %v470, %v278
  %v535 = vmax.f32 %v471, %v279
  %v536 = vmax.f32 %v472, %v280
  %v537 = vmax.f32 %v473, %v281
  %v538 = vmax.f32 %v474, %v282
  %v539 = vmax.f32 %v475, %v283
  %v540 = vmax.f32 %v476, %v284
  %v541 = vmax.f32 %v477, %v285
  %v542 = vmax.f32 %v478, %v286
  %v543 = vmax.f32 %v479, %v287
  %v544 = vmax.f32 %v480, %v288
  %v545 = vmax.f32 %v481, %v289
  %v546 = vmax.f32 %v482, %v290
  %v547 = vmax.f32 %v483, %v291
  %v548 = vmax.f32 %v484, %v292
  %v549 = vmax.f32 %v485, %v293
  %v550 = vmax.f32 %v486, %v294
  %v551 = vmax.f32 %v487, %v295
  %v552 = vmax.f32 %v488, %v296
  %v553 = vmax.f32 %v489, %v297
  %v554 = vmax.f32 %v490, %v298
  %v555 = vmax.f32 %v491, %v299
  %v556 = vmax.f32 %v492, %v300
  %v557 = vmax.f32 %v493, %v301
  %v558 = vmax.f32 %v494, %v302
  %v559 = vmax.f32 %v495, %v303
  %v560 = vmax.f32 %v496, %v304
  %v561 = vmax.f32 %v497, %v305
  %v562 = vmax.f32 %v498, %v306
  %v563 = vmax.f32 %v499, %v307
  %v564 = vmax.f32 %v500, %v308
  %v565 = vmax.f32 %v501, %v309
  %v566 = vmax.f32 %v502, %v310
  %v567 = vmax.f32 %v503, %v311
  %v568 = vmax.f32 %v504, %v312
  %v569 = vmax.f32 %v505, %v313
  %v570 = vmax.f32 %v506, %v314
  %v571 = vmax.f32 %v507, %v315
  %v572 = vmax.f32 %v508, %v316
  %v573 = vmax.f32 %v509, %v317
  %v574 = vmax.f32 %v510, %v318
  %v575 = vmax.f32 %v511, %v319
  %v576 = vmax.f32 %v512, %v320
  %v577 = vmax.f32 %v513, %v321
  %v578 = vmax.f32 %v514, %v322
  %v579 = vmax.f32 %v515, %v323
  %v580 = vmax.f32 %v516, %v324
  %v581 = vmax.f32 %v517, %v325
  %v582 = vmax.f32 %v518, %v326
  %v583 = vmax.f32 %v519, %v327
  %v584 = vmax.f32 %v520, %v328
  %v585 = vmax.f32 %v521, %v329
  %v586 = vmax.f32 %v522, %v330
  %v587 = vmax.f32 %v523, %v331
  %v588 = vmax.f32 %v524, %v332
  %v589 = vmax.f32 %v525, %v333
  %v590 = vmax.f32 %v526, %v334
  %v591 = vmax.f32 %v527, %v335
  %v592 = vmax.f32 %v528, %v336
  %v593 = vmax.f32 %v529, %v337
  %v594 = vmax.f32 %v530, %v338
  %v595 = vmax.f32 %v531, %v339
  %596 = vst [vmem:[#allocation2] sm:$0xff] %v532
  %597 = vst [vmem:[#allocation2 + $0x8] sm:$0xff] %v533
  %598 = vst [vmem:[#allocation2 + $0x10] sm:$0xff] %v534
  %599 = vst [vmem:[#allocation2 + $0x18] sm:$0xff] %v535
  %600 = vst [vmem:[#allocation2 + $0x20] sm:$0xff] %v536
  %601 = vst [vmem:[#allocation2 + $0x28] sm:$0xff] %v537
  %602 = vst [vmem:[#allocation2 + $0x30] sm:$0xff] %v538
  %603 = vst [vmem:[#allocation2 + $0x38] sm:$0xff] %v539
  %604 = vst [vmem:[#allocation2 + $0x40] sm:$0xff] %v540
  %605 = vst [vmem:[#allocation2 + $0x48] sm:$0xff] %v541
  %606 = vst [vmem:[#allocation2 + $0x50] sm:$0xff] %v542
  %607 = vst [vmem:[#allocation2 + $0x58] sm:$0xff] %v543
  %608 = vst [vmem:[#allocation2 + $0x60] sm:$0xff] %v544
  %609 = vst [vmem:[#allocation2 + $0x68] sm:$0xff] %v545
  %610 = vst [vmem:[#allocation2 + $0x70] sm:$0xff] %v546
  %611 = vst [vmem:[#allocation2 + $0x78] sm:$0xff] %v547
  %612 = vst [vmem:[#allocation2 + $0x80] sm:$0xff] %v548
  %613 = vst [vmem:[#allocation2 + $0x88] sm:$0xff] %v549
  %614 = vst [vmem:[#allocation2 + $0x90] sm:$0xff] %v550
  %615 = vst [vmem:[#allocation2 + $0x98] sm:$0xff] %v551
  %616 = vst [vmem:[#allocation2 + $0xa0] sm:$0xff] %v552
  %617 = vst [vmem:[#allocation2 + $0xa8] sm:$0xff] %v553
  %618 = vst [vmem:[#allocation2 + $0xb0] sm:$0xff] %v554
  %619 = vst [vmem:[#allocation2 + $0xb8] sm:$0xff] %v555
  %620 = vst [vmem:[#allocation2 + $0xc0] sm:$0xff] %v556
  %621 = vst [vmem:[#allocation2 + $0xc8] sm:$0xff] %v557
  %622 = vst [vmem:[#allocation2 + $0xd0] sm:$0xff] %v558
  %623 = vst [vmem:[#allocation2 + $0xd8] sm:$0xff] %v559
  %624 = vst [vmem:[#allocation2 + $0xe0] sm:$0xff] %v560
  %625 = vst [vmem:[#allocation2 + $0xe8] sm:$0xff] %v561
  %626 = vst [vmem:[#allocation2 + $0xf0] sm:$0xff] %v562
  %627 = vst [vmem:[#allocation2 + $0xf8] sm:$0xff] %v563
  %628 = vst [vmem:[#allocation2 + $0x100] sm:$0xff] %v564
  %629 = vst [vmem:[#allocation2 + $0x108] sm:$0xff] %v565
  %630 = vst [vmem:[#allocation2 + $0x110] sm:$0xff] %v566
  %631 = vst [vmem:[#allocation2 + $0x118] sm:$0xff] %v567
  %632 = vst [vmem:[#allocation2 + $0x120] sm:$0xff] %v568
  %633 = vst [vmem:[#allocation2 + $0x128] sm:$0xff] %v569
  %634 = vst [vmem:[#allocation2 + $0x130] sm:$0xff] %v570
  %635 = vst [vmem:[#allocation2 + $0x138] sm:$0xff] %v571
  %636 = vst [vmem:[#allocation2 + $0x140] sm:$0xff] %v572
  %637 = vst [vmem:[#allocation2 + $0x148] sm:$0xff] %v573
  %638 = vst [vmem:[#allocation2 + $0x150] sm:$0xff] %v574
  %639 = vst [vmem:[#allocation2 + $0x158] sm:$0xff] %v575
  %640 = vst [vmem:[#allocation2 + $0x160] sm:$0xff] %v576
  %641 = vst [vmem:[#allocation2 + $0x168] sm:$0xff] %v577
  %642 = vst [vmem:[#allocation2 + $0x170] sm:$0xff] %v578
  %643 = vst [vmem:[#allocation2 + $0x178] sm:$0xff] %v579
  %644 = vst [vmem:[#allocation2 + $0x180] sm:$0xff] %v580
  %645 = vst [vmem:[#allocation2 + $0x188] sm:$0xff] %v581
  %646 = vst [vmem:[#allocation2 + $0x190] sm:$0xff] %v582
  %647 = vst [vmem:[#allocation2 + $0x198] sm:$0xff] %v583
  %648 = vst [vmem:[#allocation2 + $0x1a0] sm:$0xff] %v584
  %649 = vst [vmem:[#allocation2 + $0x1a8] sm:$0xff] %v585
  %650 = vst [vmem:[#allocation2 + $0x1b0] sm:$0xff] %v586
  %651 = vst [vmem:[#allocation2 + $0x1b8] sm:$0xff] %v587
  %652 = vst [vmem:[#allocation2 + $0x1c0] sm:$0xff] %v588
  %653 = vst [vmem:[#allocation2 + $0x1c8] sm:$0xff] %v589
  %654 = vst [vmem:[#allocation2 + $0x1d0] sm:$0xff] %v590
  %655 = vst [vmem:[#allocation2 + $0x1d8] sm:$0xff] %v591
  %656 = vst [vmem:[#allocation2 + $0x1e0] sm:$0xff] %v592
  %657 = vst [vmem:[#allocation2 + $0x1e8] sm:$0xff] %v593
  %658 = vst [vmem:[#allocation2 + $0x1f0] sm:$0xff] %v594
  %659 = vst [vmem:[#allocation2 + $0x1f8] sm:$0xff] %v595
  %v660 = vld [vmem:[#allocation3] sm:$0xff]
  %v661 = vld [vmem:[#allocation3 + $0x8] sm:$0xff]
  %v662 = vld [vmem:[#allocation3 + $0x10] sm:$0xff]
  %v663 = vld [vmem:[#allocation3 + $0x18] sm:$0xff]
  %v664 = vld [vmem:[#allocation3 + $0x20] sm:$0xff]
  %v665 = vld [vmem:[#allocation3 + $0x28] sm:$0xff]
  %v666 = vld [vmem:[#allocation3 + $0x30] sm:$0xff]
  %v667 = vld [vmem:[#allocation3 + $0x38] sm:$0xff]
  %v668 = vld [vmem:[#allocation3 + $0x40] sm:$0xff]
  %v669 = vld [vmem:[#allocation3 + $0x48] sm:$0xff]
  %v670 = vld [vmem:[#allocation3 + $0x50] sm:$0xff]
  %v671 = vld [vmem:[#allocation3 + $0x58] sm:$0xff]
  %v672 = vld [vmem:[#allocation3 + $0x60] sm:$0xff]
  %v673 = vld [vmem:[#allocation3 + $0x68] sm:$0xff]
  %v674 = vld [vmem:[#allocation3 + $0x70] sm:$0xff]
  %v675 = vld [vmem:[#allocation3 + $0x78] sm:$0xff]
  %v676 = vld [vmem:[#allocation3 + $0x80] sm:$0xff]
  %v677 = vld [vmem:[#allocation3 + $0x88] sm:$0xff]
  %v678 = vld [vmem:[#allocation3 + $0x90] sm:$0xff]
  %v679 = vld [vmem:[#allocation3 + $0x98] sm:$0xff]
  %v680 = vld [vmem:[#allocation3 + $0xa0] sm:$0xff]
  %v681 = vld [vmem:[#allocation3 + $0xa8] sm:$0xff]
  %v682 = vld [vmem:[#allocation3 + $0xb0] sm:$0xff]
  %v683 = vld [vmem:[#allocation3 + $0xb8] sm:$0xff]
  %v684 = vld [vmem:[#allocation3 + $0xc0] sm:$0xff]
  %v685 = vld [vmem:[#allocation3 + $0xc8] sm:$0xff]
  %v686 = vld [vmem:[#allocation3 + $0xd0] sm:$0xff]
  %v687 = vld [vmem:[#allocation3 + $0xd8] sm:$0xff]
  %v688 = vld [vmem:[#allocation3 + $0xe0] sm:$0xff]
  %v689 = vld [vmem:[#allocation3 + $0xe8] sm:$0xff]
  %v690 = vld [vmem:[#allocation3 + $0xf0] sm:$0xff]
  %v691 = vld [vmem:[#allocation3 + $0xf8] sm:$0xff]
  %v692 = vld [vmem:[#allocation3 + $0x100] sm:$0xff]
  %v693 = vld [vmem:[#allocation3 + $0x108] sm:$0xff]
  %v694 = vld [vmem:[#allocation3 + $0x110] sm:$0xff]
  %v695 = vld [vmem:[#allocation3 + $0x118] sm:$0xff]
  %v696 = vld [vmem:[#allocation3 + $0x120] sm:$0xff]
  %v697 = vld [vmem:[#allocation3 + $0x128] sm:$0xff]
  %v698 = vld [vmem:[#allocation3 + $0x130] sm:$0xff]
  %v699 = vld [vmem:[#allocation3 + $0x138] sm:$0xff]
  %v700 = vld [vmem:[#allocation3 + $0x140] sm:$0xff]
  %v701 = vld [vmem:[#allocation3 + $0x148] sm:$0xff]
  %v702 = vld [vmem:[#allocation3 + $0x150] sm:$0xff]
  %v703 = vld [vmem:[#allocation3 + $0x158] sm:$0xff]
  %v704 = vld [vmem:[#allocation3 + $0x160] sm:$0xff]
  %v705 = vld [vmem:[#allocation3 + $0x168] sm:$0xff]
  %v706 = vld [vmem:[#allocation3 + $0x170] sm:$0xff]
  %v707 = vld [vmem:[#allocation3 + $0x178] sm:$0xff]
  %v708 = vld [vmem:[#allocation3 + $0x180] sm:$0xff]
  %v709 = vld [vmem:[#allocation3 + $0x188] sm:$0xff]
  %v710 = vld [vmem:[#allocation3 + $0x190] sm:$0xff]
  %v711 = vld [vmem:[#allocation3 + $0x198] sm:$0xff]
  %v712 = vld [vmem:[#allocation3 + $0x1a0] sm:$0xff]
  %v713 = vld [vmem:[#allocation3 + $0x1a8] sm:$0xff]
  %v714 = vld [vmem:[#allocation3 + $0x1b0] sm:$0xff]
  %v715 = vld [vmem:[#allocation3 + $0x1b8] sm:$0xff]
  %v716 = vld [vmem:[#allocation3 + $0x1c0] sm:$0xff]
  %v717 = vld [vmem:[#allocation3 + $0x1c8] sm:$0xff]
  %v718 = vld [vmem:[#allocation3 + $0x1d0] sm:$0xff]
  %v719 = vld [vmem:[#allocation3 + $0x1d8] sm:$0xff]
  %v720 = vld [vmem:[#allocation3 + $0x1e0] sm:$0xff]
  %v721 = vld [vmem:[#allocation3 + $0x1e8] sm:$0xff]
  %v722 = vld [vmem:[#allocation3 + $0x1f0] sm:$0xff]
  %v723 = vld [vmem:[#allocation3 + $0x1f8] sm:$0xff]
  %v724 = vmax.f32 %v660, %v340
  %v725 = vmax.f32 %v661, %v341
  %v726 = vmax.f32 %v662, %v342
  %v727 = vmax.f32 %v663, %v343
  %v728 = vmax.f32 %v664, %v344
  %v729 = vmax.f32 %v665, %v345
  %v730 = vmax.f32 %v666, %v346
  %v731 = vmax.f32 %v667, %v347
  %v732 = vmax.f32 %v668, %v348
  %v733 = vmax.f32 %v669, %v349
  %v734 = vmax.f32 %v670, %v350
  %v735 = vmax.f32 %v671, %v351
  %v736 = vmax.f32 %v672, %v352
  %v737 = vmax.f32 %v673, %v353
  %v738 = vmax.f32 %v674, %v354
  %v739 = vmax.f32 %v675, %v355
  %v740 = vmax.f32 %v676, %v356
  %v741 = vmax.f32 %v677, %v357
  %v742 = vmax.f32 %v678, %v358
  %v743 = vmax.f32 %v679, %v359
  %v744 = vmax.f32 %v680, %v360
  %v745 = vmax.f32 %v681, %v361
  %v746 = vmax.f32 %v682, %v362
  %v747 = vmax.f32 %v683, %v363
  %v748 = vmax.f32 %v684, %v364
  %v749 = vmax.f32 %v685, %v365
  %v750 = vmax.f32 %v686, %v366
  %v751 = vmax.f32 %v687, %v367
  %v752 = vmax.f32 %v688, %v368
  %v753 = vmax.f32 %v689, %v369
  %v754 = vmax.f32 %v690, %v370
  %v755 = vmax.f32 %v691, %v371
  %v756 = vmax.f32 %v692, %v372
  %v757 = vmax.f32 %v693, %v373
  %v758 = vmax.f32 %v694, %v374
  %v759 = vmax.f32 %v695, %v375
  %v760 = vmax.f32 %v696, %v376
  %v761 = vmax.f32 %v697, %v377
  %v762 = vmax.f32 %v698, %v378
  %v763 = vmax.f32 %v699, %v379
  %v764 = vmax.f32 %v700, %v380
  %v765 = vmax.f32 %v701, %v381
  %v766 = vmax.f32 %v702, %v382
  %v767 = vmax.f32 %v703, %v383
  %v768 = vmax.f32 %v704, %v384
  %v769 = vmax.f32 %v705, %v385
  %v770 = vmax.f32 %v706, %v386
  %v771 = vmax.f32 %v707, %v387
  %v772 = vmax.f32 %v708, %v388
  %v773 = vmax.f32 %v709, %v389
  %v774 = vmax.f32 %v710, %v390
  %v775 = vmax.f32 %v711, %v391
  %v776 = vmax.f32 %v712, %v392
  %v777 = vmax.f32 %v713, %v393
  %v778 = vmax.f32 %v714, %v394
  %v779 = vmax.f32 %v715, %v395
  %v780 = vmax.f32 %v716, %v396
  %v781 = vmax.f32 %v717, %v397
  %v782 = vmax.f32 %v718, %v398
  %v783 = vmax.f32 %v719, %v399
  %v784 = vmax.f32 %v720, %v400
  %v785 = vmax.f32 %v721, %v401
  %v786 = vmax.f32 %v722, %v402
  %v787 = vmax.f32 %v723, %v403
  %788 = vst [vmem:[#allocation3] sm:$0xff] %v724
  %789 = vst [vmem:[#allocation3 + $0x8] sm:$0xff] %v725
  %790 = vst [vmem:[#allocation3 + $0x10] sm:$0xff] %v726
  %791 = vst [vmem:[#allocation3 + $0x18] sm:$0xff] %v727
  %792 = vst [vmem:[#allocation3 + $0x20] sm:$0xff] %v728
  %793 = vst [vmem:[#allocation3 + $0x28] sm:$0xff] %v729
  %794 = vst [vmem:[#allocation3 + $0x30] sm:$0xff] %v730
  %795 = vst [vmem:[#allocation3 + $0x38] sm:$0xff] %v731
  %796 = vst [vmem:[#allocation3 + $0x40] sm:$0xff] %v732
  %797 = vst [vmem:[#allocation3 + $0x48] sm:$0xff] %v733
  %798 = vst [vmem:[#allocation3 + $0x50] sm:$0xff] %v734
  %799 = vst [vmem:[#allocation3 + $0x58] sm:$0xff] %v735
  %800 = vst [vmem:[#allocation3 + $0x60] sm:$0xff] %v736
  %801 = vst [vmem:[#allocation3 + $0x68] sm:$0xff] %v737
  %802 = vst [vmem:[#allocation3 + $0x70] sm:$0xff] %v738
  %803 = vst [vmem:[#allocation3 + $0x78] sm:$0xff] %v739
  %804 = vst [vmem:[#allocation3 + $0x80] sm:$0xff] %v740
  %805 = vst [vmem:[#allocation3 + $0x88] sm:$0xff] %v741
  %806 = vst [vmem:[#allocation3 + $0x90] sm:$0xff] %v742
  %807 = vst [vmem:[#allocation3 + $0x98] sm:$0xff] %v743
  %808 = vst [vmem:[#allocation3 + $0xa0] sm:$0xff] %v744
  %809 = vst [vmem:[#allocation3 + $0xa8] sm:$0xff] %v745
  %810 = vst [vmem:[#allocation3 + $0xb0] sm:$0xff] %v746
  %811 = vst [vmem:[#allocation3 + $0xb8] sm:$0xff] %v747
  %812 = vst [vmem:[#allocation3 + $0xc0] sm:$0xff] %v748
  %813 = vst [vmem:[#allocation3 + $0xc8] sm:$0xff] %v749
  %814 = vst [vmem:[#allocation3 + $0xd0] sm:$0xff] %v750
  %815 = vst [vmem:[#allocation3 + $0xd8] sm:$0xff] %v751
  %816 = vst [vmem:[#allocation3 + $0xe0] sm:$0xff] %v752
  %817 = vst [vmem:[#allocation3 + $0xe8] sm:$0xff] %v753
  %818 = vst [vmem:[#allocation3 + $0xf0] sm:$0xff] %v754
  %819 = vst [vmem:[#allocation3 + $0xf8] sm:$0xff] %v755
  %820 = vst [vmem:[#allocation3 + $0x100] sm:$0xff] %v756
  %821 = vst [vmem:[#allocation3 + $0x108] sm:$0xff] %v757
  %822 = vst [vmem:[#allocation3 + $0x110] sm:$0xff] %v758
  %823 = vst [vmem:[#allocation3 + $0x118] sm:$0xff] %v759
  %824 = vst [vmem:[#allocation3 + $0x120] sm:$0xff] %v760
  %825 = vst [vmem:[#allocation3 + $0x128] sm:$0xff] %v761
  %826 = vst [vmem:[#allocation3 + $0x130] sm:$0xff] %v762
  %827 = vst [vmem:[#allocation3 + $0x138] sm:$0xff] %v763
  %828 = vst [vmem:[#allocation3 + $0x140] sm:$0xff] %v764
  %829 = vst [vmem:[#allocation3 + $0x148] sm:$0xff] %v765
  %830 = vst [vmem:[#allocation3 + $0x150] sm:$0xff] %v766
  %831 = vst [vmem:[#allocation3 + $0x158] sm:$0xff] %v767
  %832 = vst [vmem:[#allocation3 + $0x160] sm:$0xff] %v768
  %833 = vst [vmem:[#allocation3 + $0x168] sm:$0xff] %v769
  %834 = vst [vmem:[#allocation3 + $0x170] sm:$0xff] %v770
  %835 = vst [vmem:[#allocation3 + $0x178] sm:$0xff] %v771
  %836 = vst [vmem:[#allocation3 + $0x180] sm:$0xff] %v772
  %837 = vst [vmem:[#allocation3 + $0x188] sm:$0xff] %v773
  %838 = vst [vmem:[#allocation3 + $0x190] sm:$0xff] %v774
  %839 = vst [vmem:[#allocation3 + $0x198] sm:$0xff] %v775
  %840 = vst [vmem:[#allocation3 + $0x1a0] sm:$0xff] %v776
  %841 = vst [vmem:[#allocation3 + $0x1a8] sm:$0xff] %v777
  %842 = vst [vmem:[#allocation3 + $0x1b0] sm:$0xff] %v778
  %843 = vst [vmem:[#allocation3 + $0x1b8] sm:$0xff] %v779
  %844 = vst [vmem:[#allocation3 + $0x1c0] sm:$0xff] %v780
  %845 = vst [vmem:[#allocation3 + $0x1c8] sm:$0xff] %v781
  %846 = vst [vmem:[#allocation3 + $0x1d0] sm:$0xff] %v782
  %847 = vst [vmem:[#allocation3 + $0x1d8] sm:$0xff] %v783
  %848 = vst [vmem:[#allocation3 + $0x1e0] sm:$0xff] %v784
  %849 = vst [vmem:[#allocation3 + $0x1e8] sm:$0xff] %v785
  %850 = vst [vmem:[#allocation3 + $0x1f0] sm:$0xff] %v786
  %851 = vst [vmem:[#allocation3 + $0x1f8] sm:$0xff] %v787
  %v852 = vld [vmem:[#allocation4] sm:$0xff]
  %v853 = vld [vmem:[#allocation4 + $0x8] sm:$0xff]
  %v854 = vld [vmem:[#allocation4 + $0x10] sm:$0xff]
  %v855 = vld [vmem:[#allocation4 + $0x18] sm:$0xff]
  %v856 = vld [vmem:[#allocation4 + $0x20] sm:$0xff]
  %v857 = vld [vmem:[#allocation4 + $0x28] sm:$0xff]
  %v858 = vld [vmem:[#allocation4 + $0x30] sm:$0xff]
  %v859 = vld [vmem:[#allocation4 + $0x38] sm:$0xff]
  %v860 = vld [vmem:[#allocation4 + $0x40] sm:$0xff]
  %v861 = vld [vmem:[#allocation4 + $0x48] sm:$0xff]
  %v862 = vld [vmem:[#allocation4 + $0x50] sm:$0xff]
  %v863 = vld [vmem:[#allocation4 + $0x58] sm:$0xff]
  %v864 = vld [vmem:[#allocation4 + $0x60] sm:$0xff]
  %v865 = vld [vmem:[#allocation4 + $0x68] sm:$0xff]
  %v866 = vld [vmem:[#allocation4 + $0x70] sm:$0xff]
  %v867 = vld [vmem:[#allocation4 + $0x78] sm:$0xff]
  %v868 = vld [vmem:[#allocation4 + $0x80] sm:$0xff]
  %v869 = vld [vmem:[#allocation4 + $0x88] sm:$0xff]
  %v870 = vld [vmem:[#allocation4 + $0x90] sm:$0xff]
  %v871 = vld [vmem:[#allocation4 + $0x98] sm:$0xff]
  %v872 = vld [vmem:[#allocation4 + $0xa0] sm:$0xff]
  %v873 = vld [vmem:[#allocation4 + $0xa8] sm:$0xff]
  %v874 = vld [vmem:[#allocation4 + $0xb0] sm:$0xff]
  %v875 = vld [vmem:[#allocation4 + $0xb8] sm:$0xff]
  %v876 = vld [vmem:[#allocation4 + $0xc0] sm:$0xff]
  %v877 = vld [vmem:[#allocation4 + $0xc8] sm:$0xff]
  %v878 = vld [vmem:[#allocation4 + $0xd0] sm:$0xff]
  %v879 = vld [vmem:[#allocation4 + $0xd8] sm:$0xff]
  %v880 = vld [vmem:[#allocation4 + $0xe0] sm:$0xff]
  %v881 = vld [vmem:[#allocation4 + $0xe8] sm:$0xff]
  %v882 = vld [vmem:[#allocation4 + $0xf0] sm:$0xff]
  %v883 = vld [vmem:[#allocation4 + $0xf8] sm:$0xff]
  %v884 = vld [vmem:[#allocation4 + $0x100] sm:$0xff]
  %v885 = vld [vmem:[#allocation4 + $0x108] sm:$0xff]
  %v886 = vld [vmem:[#allocation4 + $0x110] sm:$0xff]
  %v887 = vld [vmem:[#allocation4 + $0x118] sm:$0xff]
  %v888 = vld [vmem:[#allocation4 + $0x120] sm:$0xff]
  %v889 = vld [vmem:[#allocation4 + $0x128] sm:$0xff]
  %v890 = vld [vmem:[#allocation4 + $0x130] sm:$0xff]
  %v891 = vld [vmem:[#allocation4 + $0x138] sm:$0xff]
  %v892 = vld [vmem:[#allocation4 + $0x140] sm:$0xff]
  %v893 = vld [vmem:[#allocation4 + $0x148] sm:$0xff]
  %v894 = vld [vmem:[#allocation4 + $0x150] sm:$0xff]
  %v895 = vld [vmem:[#allocation4 + $0x158] sm:$0xff]
  %v896 = vld [vmem:[#allocation4 + $0x160] sm:$0xff]
  %v897 = vld [vmem:[#allocation4 + $0x168] sm:$0xff]
  %v898 = vld [vmem:[#allocation4 + $0x170] sm:$0xff]
  %v899 = vld [vmem:[#allocation4 + $0x178] sm:$0xff]
  %v900 = vld [vmem:[#allocation4 + $0x180] sm:$0xff]
  %v901 = vld [vmem:[#allocation4 + $0x188] sm:$0xff]
  %v902 = vld [vmem:[#allocation4 + $0x190] sm:$0xff]
  %v903 = vld [vmem:[#allocation4 + $0x198] sm:$0xff]
  %v904 = vld [vmem:[#allocation4 + $0x1a0] sm:$0xff]
  %v905 = vld [vmem:[#allocation4 + $0x1a8] sm:$0xff]
  %v906 = vld [vmem:[#allocation4 + $0x1b0] sm:$0xff]
  %v907 = vld [vmem:[#allocation4 + $0x1b8] sm:$0xff]
  %v908 = vld [vmem:[#allocation4 + $0x1c0] sm:$0xff]
  %v909 = vld [vmem:[#allocation4 + $0x1c8] sm:$0xff]
  %v910 = vld [vmem:[#allocation4 + $0x1d0] sm:$0xff]
  %v911 = vld [vmem:[#allocation4 + $0x1d8] sm:$0xff]
  %v912 = vld [vmem:[#allocation4 + $0x1e0] sm:$0xff]
  %v913 = vld [vmem:[#allocation4 + $0x1e8] sm:$0xff]
  %v914 = vld [vmem:[#allocation4 + $0x1f0] sm:$0xff]
  %v915 = vld [vmem:[#allocation4 + $0x1f8] sm:$0xff]
  %v916 = vmax.f32 %v852, %v404
  %v917 = vmax.f32 %v853, %v405
  %v918 = vmax.f32 %v854, %v406
  %v919 = vmax.f32 %v855, %v407
  %v920 = vmax.f32 %v856, %v408
  %v921 = vmax.f32 %v857, %v409
  %v922 = vmax.f32 %v858, %v410
  %v923 = vmax.f32 %v859, %v411
  %v924 = vmax.f32 %v860, %v412
  %v925 = vmax.f32 %v861, %v413
  %v926 = vmax.f32 %v862, %v414
  %v927 = vmax.f32 %v863, %v415
  %v928 = vmax.f32 %v864, %v416
  %v929 = vmax.f32 %v865, %v417
  %v930 = vmax.f32 %v866, %v418
  %v931 = vmax.f32 %v867, %v419
  %v932 = vmax.f32 %v868, %v420
  %v933 = vmax.f32 %v869, %v421
  %v934 = vmax.f32 %v870, %v422
  %v935 = vmax.f32 %v871, %v423
  %v936 = vmax.f32 %v872, %v424
  %v937 = vmax.f32 %v873, %v425
  %v938 = vmax.f32 %v874, %v426
  %v939 = vmax.f32 %v875, %v427
  %v940 = vmax.f32 %v876, %v428
  %v941 = vmax.f32 %v877, %v429
  %v942 = vmax.f32 %v878, %v430
  %v943 = vmax.f32 %v879, %v431
  %v944 = vmax.f32 %v880, %v432
  %v945 = vmax.f32 %v881, %v433
  %v946 = vmax.f32 %v882, %v434
  %v947 = vmax.f32 %v883, %v435
  %v948 = vmax.f32 %v884, %v436
  %v949 = vmax.f32 %v885, %v437
  %v950 = vmax.f32 %v886, %v438
  %v951 = vmax.f32 %v887, %v439
  %v952 = vmax.f32 %v888, %v440
  %v953 = vmax.f32 %v889, %v441
  %v954 = vmax.f32 %v890, %v442
  %v955 = vmax.f32 %v891, %v443
  %v956 = vmax.f32 %v892, %v444
  %v957 = vmax.f32 %v893, %v445
  %v958 = vmax.f32 %v894, %v446
  %v959 = vmax.f32 %v895, %v447
  %v960 = vmax.f32 %v896, %v448
  %v961 = vmax.f32 %v897, %v449
  %v962 = vmax.f32 %v898, %v450
  %v963 = vmax.f32 %v899, %v451
  %v964 = vmax.f32 %v900, %v452
  %v965 = vmax.f32 %v901, %v453
  %v966 = vmax.f32 %v902, %v454
  %v967 = vmax.f32 %v903, %v455
  %v968 = vmax.f32 %v904, %v456
  %v969 = vmax.f32 %v905, %v457
  %v970 = vmax.f32 %v906, %v458
  %v971 = vmax.f32 %v907, %v459
  %v972 = vmax.f32 %v908, %v460
  %v973 = vmax.f32 %v909, %v461
  %v974 = vmax.f32 %v910, %v462
  %v975 = vmax.f32 %v911, %v463
  %v976 = vmax.f32 %v912, %v464
  %v977 = vmax.f32 %v913, %v465
  %v978 = vmax.f32 %v914, %v466
  %v979 = vmax.f32 %v915, %v467
  %980 = vst [vmem:[#allocation4] sm:$0xff] %v916
  %981 = vst [vmem:[#allocation4 + $0x8] sm:$0xff] %v917
  %982 = vst [vmem:[#allocation4 + $0x10] sm:$0xff] %v918
  %983 = vst [vmem:[#allocation4 + $0x18] sm:$0xff] %v919
  %984 = vst [vmem:[#allocation4 + $0x20] sm:$0xff] %v920
  %985 = vst [vmem:[#allocation4 + $0x28] sm:$0xff] %v921
  %986 = vst [vmem:[#allocation4 + $0x30] sm:$0xff] %v922
  %987 = vst [vmem:[#allocation4 + $0x38] sm:$0xff] %v923
  %988 = vst [vmem:[#allocation4 + $0x40] sm:$0xff] %v924
  %989 = vst [vmem:[#allocation4 + $0x48] sm:$0xff] %v925
  %990 = vst [vmem:[#allocation4 + $0x50] sm:$0xff] %v926
  %991 = vst [vmem:[#allocation4 + $0x58] sm:$0xff] %v927
  %992 = vst [vmem:[#allocation4 + $0x60] sm:$0xff] %v928
  %993 = vst [vmem:[#allocation4 + $0x68] sm:$0xff] %v929
  %994 = vst [vmem:[#allocation4 + $0x70] sm:$0xff] %v930
  %995 = vst [vmem:[#allocation4 + $0x78] sm:$0xff] %v931
  %996 = vst [vmem:[#allocation4 + $0x80] sm:$0xff] %v932
  %997 = vst [vmem:[#allocation4 + $0x88] sm:$0xff] %v933
  %998 = vst [vmem:[#allocation4 + $0x90] sm:$0xff] %v934
  %999 = vst [vmem:[#allocation4 + $0x98] sm:$0xff] %v935
  %1000 = vst [vmem:[#allocation4 + $0xa0] sm:$0xff] %v936
  %1001 = vst [vmem:[#allocation4 + $0xa8] sm:$0xff] %v937
  %1002 = vst [vmem:[#allocation4 + $0xb0] sm:$0xff] %v938
  %1003 = vst [vmem:[#allocation4 + $0xb8] sm:$0xff] %v939
  %1004 = vst [vmem:[#allocation4 + $0xc0] sm:$0xff] %v940
  %1005 = vst [vmem:[#allocation4 + $0xc8] sm:$0xff] %v941
  %1006 = vst [vmem:[#allocation4 + $0xd0] sm:$0xff] %v942
  %1007 = vst [vmem:[#allocation4 + $0xd8] sm:$0xff] %v943
  %1008 = vst [vmem:[#allocation4 + $0xe0] sm:$0xff] %v944
  %1009 = vst [vmem:[#allocation4 + $0xe8] sm:$0xff] %v945
  %1010 = vst [vmem:[#allocation4 + $0xf0] sm:$0xff] %v946
  %1011 = vst [vmem:[#allocation4 + $0xf8] sm:$0xff] %v947
  %1012 = vst [vmem:[#allocation4 + $0x100] sm:$0xff] %v948
  %1013 = vst [vmem:[#allocation4 + $0x108] sm:$0xff] %v949
  %1014 = vst [vmem:[#allocation4 + $0x110] sm:$0xff] %v950
  %1015 = vst [vmem:[#allocation4 + $0x118] sm:$0xff] %v951
  %1016 = vst [vmem:[#allocation4 + $0x120] sm:$0xff] %v952
  %1017 = vst [vmem:[#allocation4 + $0x128] sm:$0xff] %v953
  %1018 = vst [vmem:[#allocation4 + $0x130] sm:$0xff] %v954
  %1019 = vst [vmem:[#allocation4 + $0x138] sm:$0xff] %v955
  %1020 = vst [vmem:[#allocation4 + $0x140] sm:$0xff] %v956
  %1021 = vst [vmem:[#allocation4 + $0x148] sm:$0xff] %v957
  %1022 = vst [vmem:[#allocation4 + $0x150] sm:$0xff] %v958
  %1023 = vst [vmem:[#allocation4 + $0x158] sm:$0xff] %v959
  %1024 = vst [vmem:[#allocation4 + $0x160] sm:$0xff] %v960
  %1025 = vst [vmem:[#allocation4 + $0x168] sm:$0xff] %v961
  %1026 = vst [vmem:[#allocation4 + $0x170] sm:$0xff] %v962
  %1027 = vst [vmem:[#allocation4 + $0x178] sm:$0xff] %v963
  %1028 = vst [vmem:[#allocation4 + $0x180] sm:$0xff] %v964
  %1029 = vst [vmem:[#allocation4 + $0x188] sm:$0xff] %v965
  %1030 = vst [vmem:[#allocation4 + $0x190] sm:$0xff] %v966
  %1031 = vst [vmem:[#allocation4 + $0x198] sm:$0xff] %v967
  %1032 = vst [vmem:[#allocation4 + $0x1a0] sm:$0xff] %v968
  %1033 = vst [vmem:[#allocation4 + $0x1a8] sm:$0xff] %v969
  %1034 = vst [vmem:[#allocation4 + $0x1b0] sm:$0xff] %v970
  %1035 = vst [vmem:[#allocation4 + $0x1b8] sm:$0xff] %v971
  %1036 = vst [vmem:[#allocation4 + $0x1c0] sm:$0xff] %v972
  %1037 = vst [vmem:[#allocation4 + $0x1c8] sm:$0xff] %v973
  %1038 = vst [vmem:[#allocation4 + $0x1d0] sm:$0xff] %v974
  %1039 = vst [vmem:[#allocation4 + $0x1d8] sm:$0xff] %v975
  %1040 = vst [vmem:[#allocation4 + $0x1e0] sm:$0xff] %v976
  %1041 = vst [vmem:[#allocation4 + $0x1e8] sm:$0xff] %v977
  %1042 = vst [vmem:[#allocation4 + $0x1f0] sm:$0xff] %v978
  %1043 = vst [vmem:[#allocation4 + $0x1f8] sm:$0xff] %v979
  // Predicated region
  $region18: #{attentionblock_forward.2} parent=0 // pred_check
    %p1044 = pneg %p80
  $region19: #{attentionblock_forward.2} parent=0 // pred_check_branch
    %1046 = sbr.rel (%p1044) target = $region21
  $region20: #{attentionblock_forward.2} parent=0 // pred_region
    %v1047 = vld [vmem:[#allocation2] sm:$0xff]
    %v1048 = vld [vmem:[#allocation2 + $0x8] sm:$0xff]
    %v1049 = vld [vmem:[#allocation2 + $0x10] sm:$0xff]
    %v1050 = vld [vmem:[#allocation2 + $0x18] sm:$0xff]
    %v1051 = vld [vmem:[#allocation2 + $0x20] sm:$0xff]
    %v1052 = vld [vmem:[#allocation2 + $0x28] sm:$0xff]
    %v1053 = vld [vmem:[#allocation2 + $0x30] sm:$0xff]
    %v1054 = vld [vmem:[#allocation2 + $0x38] sm:$0xff]
    %v1055 = vld [vmem:[#allocation2 + $0x40] sm:$0xff]
    %v1056 = vld [vmem:[#allocation2 + $0x48] sm:$0xff]
    %v1057 = vld [vmem:[#allocation2 + $0x50] sm:$0xff]
    %v1058 = vld [vmem:[#allocation2 + $0x58] sm:$0xff]
    %v1059 = vld [vmem:[#allocation2 + $0x60] sm:$0xff]
    %v1060 = vld [vmem:[#allocation2 + $0x68] sm:$0xff]
    %v1061 = vld [vmem:[#allocation2 + $0x70] sm:$0xff]
    %v1062 = vld [vmem:[#allocation2 + $0x78] sm:$0xff]
    %v1063 = vld [vmem:[#allocation2 + $0x80] sm:$0xff]
    %v1064 = vld [vmem:[#allocation2 + $0x88] sm:$0xff]
    %v1065 = vld [vmem:[#allocation2 + $0x90] sm:$0xff]
    %v1066 = vld [vmem:[#allocation2 + $0x98] sm:$0xff]
    %v1067 = vld [vmem:[#allocation2 + $0xa0] sm:$0xff]
    %v1068 = vld [vmem:[#allocation2 + $0xa8] sm:$0xff]
    %v1069 = vld [vmem:[#allocation2 + $0xb0] sm:$0xff]
    %v1070 = vld [vmem:[#allocation2 + $0xb8] sm:$0xff]
    %v1071 = vld [vmem:[#allocation2 + $0xc0] sm:$0xff]
    %v1072 = vld [vmem:[#allocation2 + $0xc8] sm:$0xff]
    %v1073 = vld [vmem:[#allocation2 + $0xd0] sm:$0xff]
    %v1074 = vld [vmem:[#allocation2 + $0xd8] sm:$0xff]
    %v1075 = vld [vmem:[#allocation2 + $0xe0] sm:$0xff]
    %v1076 = vld [vmem:[#allocation2 + $0xe8] sm:$0xff]
    %v1077 = vld [vmem:[#allocation2 + $0xf0] sm:$0xff]
    %v1078 = vld [vmem:[#allocation2 + $0xf8] sm:$0xff]
    %v1079 = vld [vmem:[#allocation2 + $0x100] sm:$0xff]
    %v1080 = vld [vmem:[#allocation2 + $0x108] sm:$0xff]
    %v1081 = vld [vmem:[#allocation2 + $0x110] sm:$0xff]
    %v1082 = vld [vmem:[#allocation2 + $0x118] sm:$0xff]
    %v1083 = vld [vmem:[#allocation2 + $0x120] sm:$0xff]
    %v1084 = vld [vmem:[#allocation2 + $0x128] sm:$0xff]
    %v1085 = vld [vmem:[#allocation2 + $0x130] sm:$0xff]
    %v1086 = vld [vmem:[#allocation2 + $0x138] sm:$0xff]
    %v1087 = vld [vmem:[#allocation2 + $0x140] sm:$0xff]
    %v1088 = vld [vmem:[#allocation2 + $0x148] sm:$0xff]
    %v1089 = vld [vmem:[#allocation2 + $0x150] sm:$0xff]
    %v1090 = vld [vmem:[#allocation2 + $0x158] sm:$0xff]
    %v1091 = vld [vmem:[#allocation2 + $0x160] sm:$0xff]
    %v1092 = vld [vmem:[#allocation2 + $0x168] sm:$0xff]
    %v1093 = vld [vmem:[#allocation2 + $0x170] sm:$0xff]
    %v1094 = vld [vmem:[#allocation2 + $0x178] sm:$0xff]
    %v1095 = vld [vmem:[#allocation2 + $0x180] sm:$0xff]
    %v1096 = vld [vmem:[#allocation2 + $0x188] sm:$0xff]
    %v1097 = vld [vmem:[#allocation2 + $0x190] sm:$0xff]
    %v1098 = vld [vmem:[#allocation2 + $0x198] sm:$0xff]
    %v1099 = vld [vmem:[#allocation2 + $0x1a0] sm:$0xff]
    %v1100 = vld [vmem:[#allocation2 + $0x1a8] sm:$0xff]
    %v1101 = vld [vmem:[#allocation2 + $0x1b0] sm:$0xff]
    %v1102 = vld [vmem:[#allocation2 + $0x1b8] sm:$0xff]
    %v1103 = vld [vmem:[#allocation2 + $0x1c0] sm:$0xff]
    %v1104 = vld [vmem:[#allocation2 + $0x1c8] sm:$0xff]
    %v1105 = vld [vmem:[#allocation2 + $0x1d0] sm:$0xff]
    %v1106 = vld [vmem:[#allocation2 + $0x1d8] sm:$0xff]
    %v1107 = vld [vmem:[#allocation2 + $0x1e0] sm:$0xff]
    %v1108 = vld [vmem:[#allocation2 + $0x1e8] sm:$0xff]
    %v1109 = vld [vmem:[#allocation2 + $0x1f0] sm:$0xff]
    %v1110 = vld [vmem:[#allocation2 + $0x1f8] sm:$0xff]
    %v1111 = vmax.f32 %v1047, %v1051
    %v1112 = vmax.f32 %v1048, %v1052
    %v1113 = vmax.f32 %v1049, %v1053
    %v1114 = vmax.f32 %v1050, %v1054
    %v1115 = vmax.f32 %v1111, %v1055
    %v1116 = vmax.f32 %v1112, %v1056
    %v1117 = vmax.f32 %v1113, %v1057
    %v1118 = vmax.f32 %v1114, %v1058
    %v1119 = vmax.f32 %v1115, %v1059
    %v1120 = vmax.f32 %v1116, %v1060
    %v1121 = vmax.f32 %v1117, %v1061
    %v1122 = vmax.f32 %v1118, %v1062
    %v1123 = vmax.f32 %v1119, %v1063
    %v1124 = vmax.f32 %v1120, %v1064
    %v1125 = vmax.f32 %v1121, %v1065
    %v1126 = vmax.f32 %v1122, %v1066
    %v1127 = vmax.f32 %v1123, %v1067
    %v1128 = vmax.f32 %v1124, %v1068
    %v1129 = vmax.f32 %v1125, %v1069
    %v1130 = vmax.f32 %v1126, %v1070
    %v1131 = vmax.f32 %v1127, %v1071
    %v1132 = vmax.f32 %v1128, %v1072
    %v1133 = vmax.f32 %v1129, %v1073
    %v1134 = vmax.f32 %v1130, %v1074
    %v1135 = vmax.f32 %v1131, %v1075
    %v1136 = vmax.f32 %v1132, %v1076
    %v1137 = vmax.f32 %v1133, %v1077
    %v1138 = vmax.f32 %v1134, %v1078
    %v1139 = vmax.f32 %v1135, %v1079
    %v1140 = vmax.f32 %v1136, %v1080
    %v1141 = vmax.f32 %v1137, %v1081
    %v1142 = vmax.f32 %v1138, %v1082
    %v1143 = vmax.f32 %v1139, %v1083
    %v1144 = vmax.f32 %v1140, %v1084
    %v1145 = vmax.f32 %v1141, %v1085
    %v1146 = vmax.f32 %v1142, %v1086
    %v1147 = vmax.f32 %v1143, %v1087
    %v1148 = vmax.f32 %v1144, %v1088
    %v1149 = vmax.f32 %v1145, %v1089
    %v1150 = vmax.f32 %v1146, %v1090
    %v1151 = vmax.f32 %v1147, %v1091
    %v1152 = vmax.f32 %v1148, %v1092
    %v1153 = vmax.f32 %v1149, %v1093
    %v1154 = vmax.f32 %v1150, %v1094
    %v1155 = vmax.f32 %v1151, %v1095
    %v1156 = vmax.f32 %v1152, %v1096
    %v1157 = vmax.f32 %v1153, %v1097
    %v1158 = vmax.f32 %v1154, %v1098
    %v1159 = vmax.f32 %v1155, %v1099
    %v1160 = vmax.f32 %v1156, %v1100
    %v1161 = vmax.f32 %v1157, %v1101
    %v1162 = vmax.f32 %v1158, %v1102
    %v1163 = vmax.f32 %v1159, %v1103
    %v1164 = vmax.f32 %v1160, %v1104
    %v1165 = vmax.f32 %v1161, %v1105
    %v1166 = vmax.f32 %v1162, %v1106
    %v1167 = vmax.f32 %v1163, %v1107
    %v1168 = vmax.f32 %v1164, %v1108
    %v1169 = vmax.f32 %v1165, %v1109
    %v1170 = vmax.f32 %v1166, %v1110
    %v1171 = vmax.f32 %v1167, %v1168
    %v1172 = vmax.f32 %v1169, %v1170
    %v1173 = vmax.f32 %v1171, %v1172
    %1174 = vmax.xlane.f32.xlu0 %v1173
    %v1175 = vpop.xlane.xlu0 %1174
    %vm1176 = vcmask 7168
    %1177 = vst.msk [vmem:[%s3] sm:$0xff] %vm1176, %v1175
    %v1178 = vld [vmem:[#allocation3] sm:$0xff]
    %v1179 = vld [vmem:[#allocation3 + $0x8] sm:$0xff]
    %v1180 = vld [vmem:[#allocation3 + $0x10] sm:$0xff]
    %v1181 = vld [vmem:[#allocation3 + $0x18] sm:$0xff]
    %v1182 = vld [vmem:[#allocation3 + $0x20] sm:$0xff]
    %v1183 = vld [vmem:[#allocation3 + $0x28] sm:$0xff]
    %v1184 = vld [vmem:[#allocation3 + $0x30] sm:$0xff]
    %v1185 = vld [vmem:[#allocation3 + $0x38] sm:$0xff]
    %v1186 = vld [vmem:[#allocation3 + $0x40] sm:$0xff]
    %v1187 = vld [vmem:[#allocation3 + $0x48] sm:$0xff]
    %v1188 = vld [vmem:[#allocation3 + $0x50] sm:$0xff]
    %v1189 = vld [vmem:[#allocation3 + $0x58] sm:$0xff]
    %v1190 = vld [vmem:[#allocation3 + $0x60] sm:$0xff]
    %v1191 = vld [vmem:[#allocation3 + $0x68] sm:$0xff]
    %v1192 = vld [vmem:[#allocation3 + $0x70] sm:$0xff]
    %v1193 = vld [vmem:[#allocation3 + $0x78] sm:$0xff]
    %v1194 = vld [vmem:[#allocation3 + $0x80] sm:$0xff]
    %v1195 = vld [vmem:[#allocation3 + $0x88] sm:$0xff]
    %v1196 = vld [vmem:[#allocation3 + $0x90] sm:$0xff]
    %v1197 = vld [vmem:[#allocation3 + $0x98] sm:$0xff]
    %v1198 = vld [vmem:[#allocation3 + $0xa0] sm:$0xff]
    %v1199 = vld [vmem:[#allocation3 + $0xa8] sm:$0xff]
    %v1200 = vld [vmem:[#allocation3 + $0xb0] sm:$0xff]
    %v1201 = vld [vmem:[#allocation3 + $0xb8] sm:$0xff]
    %v1202 = vld [vmem:[#allocation3 + $0xc0] sm:$0xff]
    %v1203 = vld [vmem:[#allocation3 + $0xc8] sm:$0xff]
    %v1204 = vld [vmem:[#allocation3 + $0xd0] sm:$0xff]
    %v1205 = vld [vmem:[#allocation3 + $0xd8] sm:$0xff]
    %v1206 = vld [vmem:[#allocation3 + $0xe0] sm:$0xff]
    %v1207 = vld [vmem:[#allocation3 + $0xe8] sm:$0xff]
    %v1208 = vld [vmem:[#allocation3 + $0xf0] sm:$0xff]
    %v1209 = vld [vmem:[#allocation3 + $0xf8] sm:$0xff]
    %v1210 = vld [vmem:[#allocation3 + $0x100] sm:$0xff]
    %v1211 = vld [vmem:[#allocation3 + $0x108] sm:$0xff]
    %v1212 = vld [vmem:[#allocation3 + $0x110] sm:$0xff]
    %v1213 = vld [vmem:[#allocation3 + $0x118] sm:$0xff]
    %v1214 = vld [vmem:[#allocation3 + $0x120] sm:$0xff]
    %v1215 = vld [vmem:[#allocation3 + $0x128] sm:$0xff]
    %v1216 = vld [vmem:[#allocation3 + $0x130] sm:$0xff]
    %v1217 = vld [vmem:[#allocation3 + $0x138] sm:$0xff]
    %v1218 = vld [vmem:[#allocation3 + $0x140] sm:$0xff]
    %v1219 = vld [vmem:[#allocation3 + $0x148] sm:$0xff]
    %v1220 = vld [vmem:[#allocation3 + $0x150] sm:$0xff]
    %v1221 = vld [vmem:[#allocation3 + $0x158] sm:$0xff]
    %v1222 = vld [vmem:[#allocation3 + $0x160] sm:$0xff]
    %v1223 = vld [vmem:[#allocation3 + $0x168] sm:$0xff]
    %v1224 = vld [vmem:[#allocation3 + $0x170] sm:$0xff]
    %v1225 = vld [vmem:[#allocation3 + $0x178] sm:$0xff]
    %v1226 = vld [vmem:[#allocation3 + $0x180] sm:$0xff]
    %v1227 = vld [vmem:[#allocation3 + $0x188] sm:$0xff]
    %v1228 = vld [vmem:[#allocation3 + $0x190] sm:$0xff]
    %v1229 = vld [vmem:[#allocation3 + $0x198] sm:$0xff]
    %v1230 = vld [vmem:[#allocation3 + $0x1a0] sm:$0xff]
    %v1231 = vld [vmem:[#allocation3 + $0x1a8] sm:$0xff]
    %v1232 = vld [vmem:[#allocation3 + $0x1b0] sm:$0xff]
    %v1233 = vld [vmem:[#allocation3 + $0x1b8] sm:$0xff]
    %v1234 = vld [vmem:[#allocation3 + $0x1c0] sm:$0xff]
    %v1235 = vld [vmem:[#allocation3 + $0x1c8] sm:$0xff]
    %v1236 = vld [vmem:[#allocation3 + $0x1d0] sm:$0xff]
    %v1237 = vld [vmem:[#allocation3 + $0x1d8] sm:$0xff]
    %v1238 = vld [vmem:[#allocation3 + $0x1e0] sm:$0xff]
    %v1239 = vld [vmem:[#allocation3 + $0x1e8] sm:$0xff]
    %v1240 = vld [vmem:[#allocation3 + $0x1f0] sm:$0xff]
    %v1241 = vld [vmem:[#allocation3 + $0x1f8] sm:$0xff]
    %v1242 = vmax.f32 %v1178, %v1182
    %v1243 = vmax.f32 %v1179, %v1183
    %v1244 = vmax.f32 %v1180, %v1184
    %v1245 = vmax.f32 %v1181, %v1185
    %v1246 = vmax.f32 %v1242, %v1186
    %v1247 = vmax.f32 %v1243, %v1187
    %v1248 = vmax.f32 %v1244, %v1188
    %v1249 = vmax.f32 %v1245, %v1189
    %v1250 = vmax.f32 %v1246, %v1190
    %v1251 = vmax.f32 %v1247, %v1191
    %v1252 = vmax.f32 %v1248, %v1192
    %v1253 = vmax.f32 %v1249, %v1193
    %v1254 = vmax.f32 %v1250, %v1194
    %v1255 = vmax.f32 %v1251, %v1195
    %v1256 = vmax.f32 %v1252, %v1196
    %v1257 = vmax.f32 %v1253, %v1197
    %v1258 = vmax.f32 %v1254, %v1198
    %v1259 = vmax.f32 %v1255, %v1199
    %v1260 = vmax.f32 %v1256, %v1200
    %v1261 = vmax.f32 %v1257, %v1201
    %v1262 = vmax.f32 %v1258, %v1202
    %v1263 = vmax.f32 %v1259, %v1203
    %v1264 = vmax.f32 %v1260, %v1204
    %v1265 = vmax.f32 %v1261, %v1205
    %v1266 = vmax.f32 %v1262, %v1206
    %v1267 = vmax.f32 %v1263, %v1207
    %v1268 = vmax.f32 %v1264, %v1208
    %v1269 = vmax.f32 %v1265, %v1209
    %v1270 = vmax.f32 %v1266, %v1210
    %v1271 = vmax.f32 %v1267, %v1211
    %v1272 = vmax.f32 %v1268, %v1212
    %v1273 = vmax.f32 %v1269, %v1213
    %v1274 = vmax.f32 %v1270, %v1214
    %v1275 = vmax.f32 %v1271, %v1215
    %v1276 = vmax.f32 %v1272, %v1216
    %v1277 = vmax.f32 %v1273, %v1217
    %v1278 = vmax.f32 %v1274, %v1218
    %v1279 = vmax.f32 %v1275, %v1219
    %v1280 = vmax.f32 %v1276, %v1220
    %v1281 = vmax.f32 %v1277, %v1221
    %v1282 = vmax.f32 %v1278, %v1222
    %v1283 = vmax.f32 %v1279, %v1223
    %v1284 = vmax.f32 %v1280, %v1224
    %v1285 = vmax.f32 %v1281, %v1225
    %v1286 = vmax.f32 %v1282, %v1226
    %v1287 = vmax.f32 %v1283, %v1227
    %v1288 = vmax.f32 %v1284, %v1228
    %v1289 = vmax.f32 %v1285, %v1229
    %v1290 = vmax.f32 %v1286, %v1230
    %v1291 = vmax.f32 %v1287, %v1231
    %v1292 = vmax.f32 %v1288, %v1232
    %v1293 = vmax.f32 %v1289, %v1233
    %v1294 = vmax.f32 %v1290, %v1234
    %v1295 = vmax.f32 %v1291, %v1235
    %v1296 = vmax.f32 %v1292, %v1236
    %v1297 = vmax.f32 %v1293, %v1237
    %v1298 = vmax.f32 %v1294, %v1238
    %v1299 = vmax.f32 %v1295, %v1239
    %v1300 = vmax.f32 %v1296, %v1240
    %v1301 = vmax.f32 %v1297, %v1241
    %v1302 = vmax.f32 %v1298, %v1299
    %v1303 = vmax.f32 %v1300, %v1301
    %v1304 = vmax.f32 %v1302, %v1303
    %1305 = vmax.xlane.f32.xlu0 %v1304
    %v1306 = vpop.xlane.xlu0 %1305
    %s1307 = scalar_lea.vmem %s3, 8
    %1308 = vst.msk [vmem:[%s1307] sm:$0xff] %vm1176, %v1306
    %v1309 = vld [vmem:[#allocation4] sm:$0xff]
    %v1310 = vld [vmem:[#allocation4 + $0x8] sm:$0xff]
    %v1311 = vld [vmem:[#allocation4 + $0x10] sm:$0xff]
    %v1312 = vld [vmem:[#allocation4 + $0x18] sm:$0xff]
    %v1313 = vld [vmem:[#allocation4 + $0x20] sm:$0xff]
    %v1314 = vld [vmem:[#allocation4 + $0x28] sm:$0xff]
    %v1315 = vld [vmem:[#allocation4 + $0x30] sm:$0xff]
    %v1316 = vld [vmem:[#allocation4 + $0x38] sm:$0xff]
    %v1317 = vld [vmem:[#allocation4 + $0x40] sm:$0xff]
    %v1318 = vld [vmem:[#allocation4 + $0x48] sm:$0xff]
    %v1319 = vld [vmem:[#allocation4 + $0x50] sm:$0xff]
    %v1320 = vld [vmem:[#allocation4 + $0x58] sm:$0xff]
    %v1321 = vld [vmem:[#allocation4 + $0x60] sm:$0xff]
    %v1322 = vld [vmem:[#allocation4 + $0x68] sm:$0xff]
    %v1323 = vld [vmem:[#allocation4 + $0x70] sm:$0xff]
    %v1324 = vld [vmem:[#allocation4 + $0x78] sm:$0xff]
    %v1325 = vld [vmem:[#allocation4 + $0x80] sm:$0xff]
    %v1326 = vld [vmem:[#allocation4 + $0x88] sm:$0xff]
    %v1327 = vld [vmem:[#allocation4 + $0x90] sm:$0xff]
    %v1328 = vld [vmem:[#allocation4 + $0x98] sm:$0xff]
    %v1329 = vld [vmem:[#allocation4 + $0xa0] sm:$0xff]
    %v1330 = vld [vmem:[#allocation4 + $0xa8] sm:$0xff]
    %v1331 = vld [vmem:[#allocation4 + $0xb0] sm:$0xff]
    %v1332 = vld [vmem:[#allocation4 + $0xb8] sm:$0xff]
    %v1333 = vld [vmem:[#allocation4 + $0xc0] sm:$0xff]
    %v1334 = vld [vmem:[#allocation4 + $0xc8] sm:$0xff]
    %v1335 = vld [vmem:[#allocation4 + $0xd0] sm:$0xff]
    %v1336 = vld [vmem:[#allocation4 + $0xd8] sm:$0xff]
    %v1337 = vld [vmem:[#allocation4 + $0xe0] sm:$0xff]
    %v1338 = vld [vmem:[#allocation4 + $0xe8] sm:$0xff]
    %v1339 = vld [vmem:[#allocation4 + $0xf0] sm:$0xff]
    %v1340 = vld [vmem:[#allocation4 + $0xf8] sm:$0xff]
    %v1341 = vld [vmem:[#allocation4 + $0x100] sm:$0xff]
    %v1342 = vld [vmem:[#allocation4 + $0x108] sm:$0xff]
    %v1343 = vld [vmem:[#allocation4 + $0x110] sm:$0xff]
    %v1344 = vld [vmem:[#allocation4 + $0x118] sm:$0xff]
    %v1345 = vld [vmem:[#allocation4 + $0x120] sm:$0xff]
    %v1346 = vld [vmem:[#allocation4 + $0x128] sm:$0xff]
    %v1347 = vld [vmem:[#allocation4 + $0x130] sm:$0xff]
    %v1348 = vld [vmem:[#allocation4 + $0x138] sm:$0xff]
    %v1349 = vld [vmem:[#allocation4 + $0x140] sm:$0xff]
    %v1350 = vld [vmem:[#allocation4 + $0x148] sm:$0xff]
    %v1351 = vld [vmem:[#allocation4 + $0x150] sm:$0xff]
    %v1352 = vld [vmem:[#allocation4 + $0x158] sm:$0xff]
    %v1353 = vld [vmem:[#allocation4 + $0x160] sm:$0xff]
    %v1354 = vld [vmem:[#allocation4 + $0x168] sm:$0xff]
    %v1355 = vld [vmem:[#allocation4 + $0x170] sm:$0xff]
    %v1356 = vld [vmem:[#allocation4 + $0x178] sm:$0xff]
    %v1357 = vld [vmem:[#allocation4 + $0x180] sm:$0xff]
    %v1358 = vld [vmem:[#allocation4 + $0x188] sm:$0xff]
    %v1359 = vld [vmem:[#allocation4 + $0x190] sm:$0xff]
    %v1360 = vld [vmem:[#allocation4 + $0x198] sm:$0xff]
    %v1361 = vld [vmem:[#allocation4 + $0x1a0] sm:$0xff]
    %v1362 = vld [vmem:[#allocation4 + $0x1a8] sm:$0xff]
    %v1363 = vld [vmem:[#allocation4 + $0x1b0] sm:$0xff]
    %v1364 = vld [vmem:[#allocation4 + $0x1b8] sm:$0xff]
    %v1365 = vld [vmem:[#allocation4 + $0x1c0] sm:$0xff]
    %v1366 = vld [vmem:[#allocation4 + $0x1c8] sm:$0xff]
    %v1367 = vld [vmem:[#allocation4 + $0x1d0] sm:$0xff]
    %v1368 = vld [vmem:[#allocation4 + $0x1d8] sm:$0xff]
    %v1369 = vld [vmem:[#allocation4 + $0x1e0] sm:$0xff]
    %v1370 = vld [vmem:[#allocation4 + $0x1e8] sm:$0xff]
    %v1371 = vld [vmem:[#allocation4 + $0x1f0] sm:$0xff]
    %v1372 = vld [vmem:[#allocation4 + $0x1f8] sm:$0xff]
    %v1373 = vmax.f32 %v1309, %v1313
    %v1374 = vmax.f32 %v1310, %v1314
    %v1375 = vmax.f32 %v1311, %v1315
    %v1376 = vmax.f32 %v1312, %v1316
    %v1377 = vmax.f32 %v1373, %v1317
    %v1378 = vmax.f32 %v1374, %v1318
    %v1379 = vmax.f32 %v1375, %v1319
    %v1380 = vmax.f32 %v1376, %v1320
    %v1381 = vmax.f32 %v1377, %v1321
    %v1382 = vmax.f32 %v1378, %v1322
    %v1383 = vmax.f32 %v1379, %v1323
    %v1384 = vmax.f32 %v1380, %v1324
    %v1385 = vmax.f32 %v1381, %v1325
    %v1386 = vmax.f32 %v1382, %v1326
    %v1387 = vmax.f32 %v1383, %v1327
    %v1388 = vmax.f32 %v1384, %v1328
    %v1389 = vmax.f32 %v1385, %v1329
    %v1390 = vmax.f32 %v1386, %v1330
    %v1391 = vmax.f32 %v1387, %v1331
    %v1392 = vmax.f32 %v1388, %v1332
    %v1393 = vmax.f32 %v1389, %v1333
    %v1394 = vmax.f32 %v1390, %v1334
    %v1395 = vmax.f32 %v1391, %v1335
    %v1396 = vmax.f32 %v1392, %v1336
    %v1397 = vmax.f32 %v1393, %v1337
    %v1398 = vmax.f32 %v1394, %v1338
    %v1399 = vmax.f32 %v1395, %v1339
    %v1400 = vmax.f32 %v1396, %v1340
    %v1401 = vmax.f32 %v1397, %v1341
    %v1402 = vmax.f32 %v1398, %v1342
    %v1403 = vmax.f32 %v1399, %v1343
    %v1404 = vmax.f32 %v1400, %v1344
    %v1405 = vmax.f32 %v1401, %v1345
    %v1406 = vmax.f32 %v1402, %v1346
    %v1407 = vmax.f32 %v1403, %v1347
    %v1408 = vmax.f32 %v1404, %v1348
    %v1409 = vmax.f32 %v1405, %v1349
    %v1410 = vmax.f32 %v1406, %v1350
    %v1411 = vmax.f32 %v1407, %v1351
    %v1412 = vmax.f32 %v1408, %v1352
    %v1413 = vmax.f32 %v1409, %v1353
    %v1414 = vmax.f32 %v1410, %v1354
    %v1415 = vmax.f32 %v1411, %v1355
    %v1416 = vmax.f32 %v1412, %v1356
    %v1417 = vmax.f32 %v1413, %v1357
    %v1418 = vmax.f32 %v1414, %v1358
    %v1419 = vmax.f32 %v1415, %v1359
    %v1420 = vmax.f32 %v1416, %v1360
    %v1421 = vmax.f32 %v1417, %v1361
    %v1422 = vmax.f32 %v1418, %v1362
    %v1423 = vmax.f32 %v1419, %v1363
    %v1424 = vmax.f32 %v1420, %v1364
    %v1425 = vmax.f32 %v1421, %v1365
    %v1426 = vmax.f32 %v1422, %v1366
    %v1427 = vmax.f32 %v1423, %v1367
    %v1428 = vmax.f32 %v1424, %v1368
    %v1429 = vmax.f32 %v1425, %v1369
    %v1430 = vmax.f32 %v1426, %v1370
    %v1431 = vmax.f32 %v1427, %v1371
    %v1432 = vmax.f32 %v1428, %v1372
    %v1433 = vmax.f32 %v1429, %v1430
    %v1434 = vmax.f32 %v1431, %v1432
    %v1435 = vmax.f32 %v1433, %v1434
    %1436 = vmax.xlane.f32.xlu0 %v1435
    %v1437 = vpop.xlane.xlu0 %1436
    %s1438 = scalar_lea.vmem %s3, 16
    %1439 = vst.msk [vmem:[%s1438] sm:$0xff] %vm1176, %v1437
  $region21: #{attentionblock_forward.2} parent=0 // pred_fallthru
    _
  // Predicated region
  $region22: #{attentionblock_forward.2} parent=0 // pred_check
    _
  $region23: #{attentionblock_forward.2} parent=0 // pred_check_branch
    %1441 = sbr.rel (0) target = $region25
  $region24: #{attentionblock_forward.2} parent=0 // pred_region
    _
  $region25: #{attentionblock_forward.2} parent=0 // pred_fallthru
    _
  // Predicated region
  $region26: #{attentionblock_forward.2} parent=0 // pred_check
    _
  $region27: #{attentionblock_forward.2} parent=0 // pred_check_branch
    %1443 = sbr.rel (0) target = $region29
  $region28: #{attentionblock_forward.2} parent=0 // pred_region
    _
  $region29: #{attentionblock_forward.2} parent=0 // pred_fallthru
    _

</llo_original>
